<compile_context>
chip_gen: v7x
topology: tpu7x:2x2x1
jax: 0.10.0
libtpu: 0.0.40
codegen_flags: <defaults>
</compile_context>

<pallas_src>
import jax
import jax.numpy as jnp
from jax.experimental import pallas as pl
from jax.experimental.pallas import tpu as pltpu

_LANES = 128          # lane-dense output width (one full vreg lane set)
_MASK_VALUE = -1e30   # bias padding value; exp() underflows to exactly 0


# --------------------------------------------------------------------------
# Fused kernel: backbone -> MLP_Res heads -> log_softmax -> merged store
# --------------------------------------------------------------------------
def _fused_kernel(ps_ref, pe_ref,
                  w1_ref, b1_ref, w2_ref, b2_ref,
                  s_w1_ref, s_b1_ref, s_w2_ref, s_ws_ref, s_b_ref,
                  e_w1_ref, e_b1_ref, e_w2_ref, e_ws_ref, e_b_ref,
                  o_ref):

    def backbone(x_ref):
        x = x_ref[...].astype(jnp.float32)                      # (tp, C) f32
        # First layer: K = C (tiny) -> VPU broadcast FMAs (w1/b1 kept f32).
        h = x[:, 0:1] * w1_ref[0:1, :]
        for k in range(1, x.shape[1]):
            h = h + x[:, k:k + 1] * w1_ref[k:k + 1, :]
        h = jnp.maximum(h + b1_ref[...], 0.0)                   # (tp, F)
        f = jnp.dot(h.astype(w2_ref.dtype), w2_ref[...],
                    preferred_element_type=jnp.float32)
        return jnp.maximum(f + b2_ref[...].astype(jnp.float32), 0.0)

    def head(x, w1h_ref, b1h_ref, w2h_ref, wsh_ref, bh_ref):
        # MLP_Res: conv_2(relu(conv_1(x))) + conv_shortcut(x), then
        # log_softmax.  conv_2 / shortcut stay as two dots into one f32
        # accumulator (no concat copy).  Padded class lanes carry -1e30 bias,
        # so no masking is needed: exp() underflows to 0 and the normalizer
        # only sees the real classes.
        xc = x.astype(w1h_ref.dtype)
        h = jnp.dot(xc, w1h_ref[...], preferred_element_type=jnp.float32)
        h = jnp.maximum(h + b1h_ref[...].astype(jnp.float32), 0.0)
        logits = (jnp.dot(h.astype(w2h_ref.dtype), w2h_ref[...],
                          preferred_element_type=jnp.float32)
                  + jnp.dot(xc, wsh_ref[...],
                            preferred_element_type=jnp.float32)
                  + bh_ref[...].astype(jnp.float32))             # (tp, 128)
        m = jnp.max(logits, axis=-1, keepdims=True)
        z = logits - m
        lse = jnp.log(jnp.sum(jnp.exp(z), axis=-1, keepdims=True))
        return z - lse                                           # (tp, 128)

    f_start = backbone(ps_ref)
    f_end = backbone(pe_ref)
    lp_s = head(f_start, s_w1_ref, s_b1_ref, s_w2_ref, s_ws_ref, s_b_ref)
    lp_e = head(f_end, e_w1_ref, e_b1_ref, e_w2_ref, e_ws_ref, e_b_ref)
    # Merge: each head's valid lanes are ~O(1), its padded lanes ~-1e30, and
    # the two valid lane windows are disjoint -> elementwise max picks the
    # right head per lane in a single VPU pass.
    o_ref[...] = jnp.maximum(lp_s, lp_e).astype(o_ref.dtype)


# --------------------------------------------------------------------------
# Wrapper (pallas_call plumbing + weight packing / lane placement)
# --------------------------------------------------------------------------
def _pack_head_params(p, dtype, lane_lo):
    """Place a head's classes at lanes [lane_lo, lane_lo+o); pad bias -1e30."""
    w1, b1, w2, b2, ws, bs = p
    o = w2.shape[1]
    lane_hi = _LANES - lane_lo - o
    assert lane_hi >= 0, (lane_lo, o)
    pad = ((0, 0), (lane_lo, lane_hi))
    w2p = jnp.pad(w2, pad).astype(dtype)
    wsp = jnp.pad(ws, pad).astype(dtype)
    bp = jnp.pad((b2 + bs).astype(jnp.float32), pad,
                 constant_values=_MASK_VALUE)                    # (1, 128) f32
    return (w1.astype(dtype), b1.astype(jnp.float32), w2p, wsp, bp, o)


def _pick_tile(N, B):
    cands = [c for c in (2048, 1024, 512, 256, 128, 64, 32, 16, 8)
             if N % c == 0]
    if not cands:
        return N
    if B == 1:
        # v7x has 2 TCs/chip: make sure the flattened grid has >= 2 steps.
        smaller = [c for c in cands if c < N]
        if smaller:
            return smaller[0]
    return cands[0]


def segnet_wo_motion_forward(pcs_start, pcs_end, params, num_points,
                             *, compute_dtype=jnp.float32, tile_points=None):
    """Mirror of SegNetWoMotion.forward (PointNeXt stub, exact heads)."""
    B, N, C = pcs_start.shape
    assert N == num_points, "stub assumes num_points == points per cloud"
    assert pcs_end.shape == (B, N, C)

    w1, b1, w2, b2 = params["backbone"]
    w1 = w1.astype(jnp.float32)          # tiny first layer stays f32 (VPU)
    b1 = b1.astype(jnp.float32)
    w2 = w2.astype(compute_dtype)        # MXU weight
    b2 = b2.astype(jnp.float32)
    Fd = w2.shape[1]

    s_w1, s_b1, s_w2, s_ws, s_b, o_start = _pack_head_params(
        params["mlp_start"], compute_dtype, lane_lo=0)
    e_w1, e_b1, e_w2, e_ws, e_b, o_end = _pack_head_params(
        params["mlp_end"], compute_dtype, lane_lo=o_start)
    assert o_start + o_end <= _LANES
    H = s_w1.shape[1]

    if tile_points is None:
        tile_points = _pick_tile(N, B)
    tp = tile_points
    assert N % tp == 0 and (tp % 8 == 0 or tp == N), (N, tp)

    # Point coordinates stay f32 even on the bf16 path (geometry precision).
    pcs_start = pcs_start.astype(jnp.float32)
    pcs_end = pcs_end.astype(jnp.float32)

    def pts_map(b, p):
        return (b, p, 0)

    def w_map(b, p):
        return (0, 0)

    weight_args = (w1, b1, w2, b2,
                   s_w1, s_b1, s_w2, s_ws, s_b,
                   e_w1, e_b1, e_w2, e_ws, e_b)
    weight_bytes = sum(int(a.size) * a.dtype.itemsize for a in weight_args)
    tile_bytes = tp * _LANES * 4
    # 2 lane-padded point tiles + 1 output tile, double-buffered, weights
    # double-buffered, plus headroom for f32 intermediates.
    vmem_est = (2 * 2 * tile_bytes + 2 * tile_bytes
                + 2 * weight_bytes + 10 * tile_bytes)
    # Cap under v7x's 64 MiB physical VMEM; floor at the usual 32 MiB scope.
    vmem_limit = int(min(max(vmem_est, 32 << 20), 56 << 20))

    out = pl.pallas_call(
        _fused_kernel,
        out_shape=jax.ShapeDtypeStruct((B, N, _LANES), jnp.float32),
        grid=(B, N // tp),
        in_specs=[
            pl.BlockSpec((None, tp, C), pts_map),          # pcs_start tile
            pl.BlockSpec((None, tp, C), pts_map),          # pcs_end tile
            pl.BlockSpec((C, Fd), w_map),                  # backbone W1 (f32)
            pl.BlockSpec((1, Fd), w_map),                  # backbone b1 (f32)
            pl.BlockSpec((Fd, Fd), w_map),                 # backbone W2
            pl.BlockSpec((1, Fd), w_map),                  # backbone b2 (f32)
            pl.BlockSpec((Fd, H), w_map),                  # start conv_1 W
            pl.BlockSpec((1, H), w_map),                   # start conv_1 b
            pl.BlockSpec((H, _LANES), w_map),              # start conv_2 W
            pl.BlockSpec((Fd, _LANES), w_map),             # start shortcut W
            pl.BlockSpec((1, _LANES), w_map),              # start fused bias
            pl.BlockSpec((Fd, H), w_map),                  # end conv_1 W
            pl.BlockSpec((1, H), w_map),                   # end conv_1 b
            pl.BlockSpec((H, _LANES), w_map),              # end conv_2 W
            pl.BlockSpec((Fd, _LANES), w_map),             # end shortcut W
            pl.BlockSpec((1, _LANES), w_map),              # end fused bias
        ],
        out_specs=pl.BlockSpec((None, tp, _LANES), pts_map),
        compiler_params=pltpu.CompilerParams(
            dimension_semantics=("parallel", "parallel"),
            vmem_limit_bytes=vmem_limit),
    )(pcs_start, pcs_end, *weight_args)

    # Slice the two class windows out of the merged lane-dense slab.
    seg_start = out[:, :, :o_start]
    seg_end = out[:, :, o_start:o_start + o_end]
    return seg_start, seg_end


# --------------------------------------------------------------------------
# Deterministic parameter init + pure-JAX reference for a sanity check
# --------------------------------------------------------------------------
def init_params(key, in_dim, feat_dim, mlp_dim):
    ks = jax.random.split(key, 12)
    s = 0.1

    def w(k, shape):
        return (s * jax.random.normal(k, shape)).astype(jnp.float32)

    backbone_p = (w(ks[0], (in_dim, feat_dim)), w(ks[1], (1, feat_dim)),
                  w(ks[2], (feat_dim, feat_dim)), w(ks[3], (1, feat_dim)))
    # MLP_Res(feat_dim, mlp_dim, out_dim): conv_1, conv_2, conv_shortcut
    mlp_start_p = (w(ks[4], (feat_dim, mlp_dim)), w(ks[5], (1, mlp_dim)),
                   w(ks[6], (mlp_dim, 2)), w(ks[7], (1, 2)),
                   w(ks[8], (feat_dim, 2)), w(ks[9], (1, 2)))
    mlp_end_p = (w(ks[10], (feat_dim, mlp_dim)), w(ks[11], (1, mlp_dim)),
                 w(jax.random.fold_in(key, 100), (mlp_dim, 3)),
                 w(jax.random.fold_in(key, 101), (1, 3)),
                 w(jax.random.fold_in(key, 102), (feat_dim, 3)),
                 w(jax.random.fold_in(key, 103), (1, 3)))
    return {"backbone": backbone_p, "mlp_start": mlp_start_p,
            "mlp_end": mlp_end_p}


def _ref_forward(pcs_start, pcs_end, params, num_points):
    pcs = jnp.concatenate([pcs_start, pcs_end], axis=1)
    w1, b1, w2, b2 = params["backbone"]
    h = jax.nn.relu(pcs @ w1 + b1)
    feat = jax.nn.relu(h @ w2 + b2)

    def head(x, p):
        hw1, hb1, hw2, hb2, hws, hbs = p
        hh = jax.nn.relu(x @ hw1 + hb1)
        logits = hh @ hw2 + hb2 + x @ hws + hbs
        return jax.nn.log_softmax(logits, axis=-1)

    return (head(feat[:, :num_points], params["mlp_start"]),
            head(feat[:, num_points:], params["mlp_end"]))


# --------------------------------------------------------------------------
if __name__ == "__main__":
    B, N, C = 2, 64, 3            # num_points = N (small demo shapes)
    feat_dim, mlp_dim = 128, 256  # lane-aligned widths (multiples of 128)

    key = jax.random.PRNGKey(0)
    kp, ks, ke = jax.random.split(key, 3)
    params = init_params(kp, C, feat_dim, mlp_dim)
    pcs_start = jax.random.normal(ks, (B, N, C), dtype=jnp.float32)
    pcs_end = jax.random.normal(ke, (B, N, C), dtype=jnp.float32)

    # f32 path (strict correctness check against pure-JAX reference).
    seg_start, seg_end = segnet_wo_motion_forward(pcs_start, pcs_end, params, N)
    jax.block_until_ready((seg_start, seg_end))

    assert seg_start.shape == (B, N, 2), seg_start.shape
    assert seg_end.shape == (B, N, 3), seg_end.shape

    ref_start, ref_end = _ref_forward(pcs_start, pcs_end, params, N)
    assert jnp.allclose(seg_start, ref_start, atol=1e-4, rtol=1e-4)
    assert jnp.allclose(seg_end, ref_end, atol=1e-4, rtol=1e-4)
    # log_softmax sanity: rows sum to 1 in prob space
    assert jnp.allclose(jnp.exp(seg_start).sum(-1), 1.0, atol=1e-4)
    assert jnp.allclose(jnp.exp(seg_end).sum(-1), 1.0, atol=1e-4)

    # bf16 compute path (bf16 MXU operands, f32 points/bias/accumulation).
    seg_start_bf, seg_end_bf = segnet_wo_motion_forward(
        pcs_start, pcs_end, params, N, compute_dtype=jnp.bfloat16)
    jax.block_until_ready((seg_start_bf, seg_end_bf))
    assert seg_start_bf.shape == (B, N, 2)
    assert seg_end_bf.shape == (B, N, 3)
    assert jnp.allclose(seg_start_bf, ref_start, atol=0.1, rtol=0.1)
    assert jnp.allclose(seg_end_bf, ref_end, atol=0.1, rtol=0.1)
    assert jnp.allclose(jnp.exp(seg_start_bf).sum(-1), 1.0, atol=1e-2)
    assert jnp.allclose(jnp.exp(seg_end_bf).sum(-1), 1.0, atol=1e-2)

    print("KERNEL_OK")
</pallas_src>

<mosaic_0001>
module attributes {stable_mosaic.version = 11 : i64} {
  func.func @_fused_kernel(%arg0: i32, %arg1: i32, %arg2: memref<1x64x3xf32, #tpu.memory_space<vmem>>, %arg3: memref<1x64x3xf32, #tpu.memory_space<vmem>>, %arg4: memref<3x128xf32, #tpu.memory_space<vmem>>, %arg5: memref<1x128xf32, #tpu.memory_space<vmem>>, %arg6: memref<128x128xf32, #tpu.memory_space<vmem>>, %arg7: memref<1x128xf32, #tpu.memory_space<vmem>>, %arg8: memref<128x256xf32, #tpu.memory_space<vmem>>, %arg9: memref<1x256xf32, #tpu.memory_space<vmem>>, %arg10: memref<256x128xf32, #tpu.memory_space<vmem>>, %arg11: memref<128x128xf32, #tpu.memory_space<vmem>>, %arg12: memref<1x128xf32, #tpu.memory_space<vmem>>, %arg13: memref<128x256xf32, #tpu.memory_space<vmem>>, %arg14: memref<1x256xf32, #tpu.memory_space<vmem>>, %arg15: memref<256x128xf32, #tpu.memory_space<vmem>>, %arg16: memref<128x128xf32, #tpu.memory_space<vmem>>, %arg17: memref<1x128xf32, #tpu.memory_space<vmem>>, %arg18: memref<1x64x128xf32, #tpu.memory_space<vmem>>) attributes {dimension_semantics = [#tpu.dimension_semantics<parallel>, #tpu.dimension_semantics<parallel>], iteration_bounds = array<i64: 2, 1>, scalar_prefetch = 0 : i64, scratch_operands = 0 : i64, tpu.core_type = #tpu.core_type<tc>, window_params = [{transform_indices = @transform_0, window_bounds = array<i64: 1, 64, 3>}, {transform_indices = @transform_1, window_bounds = array<i64: 1, 64, 3>}, {pipeline_mode = #tpu.pipeline_mode<synchronous>, transform_indices = @transform_2, window_bounds = array<i64: 3, 128>}, {pipeline_mode = #tpu.pipeline_mode<synchronous>, transform_indices = @transform_3, window_bounds = array<i64: 1, 128>}, {pipeline_mode = #tpu.pipeline_mode<synchronous>, transform_indices = @transform_4, window_bounds = array<i64: 128, 128>}, {pipeline_mode = #tpu.pipeline_mode<synchronous>, transform_indices = @transform_5, window_bounds = array<i64: 1, 128>}, {pipeline_mode = #tpu.pipeline_mode<synchronous>, transform_indices = @transform_6, window_bounds = array<i64: 128, 256>}, {pipeline_mode = #tpu.pipeline_mode<synchronous>, transform_indices = @transform_7, window_bounds = array<i64: 1, 256>}, {pipeline_mode = #tpu.pipeline_mode<synchronous>, transform_indices = @transform_8, window_bounds = array<i64: 256, 128>}, {pipeline_mode = #tpu.pipeline_mode<synchronous>, transform_indices = @transform_9, window_bounds = array<i64: 128, 128>}, {pipeline_mode = #tpu.pipeline_mode<synchronous>, transform_indices = @transform_10, window_bounds = array<i64: 1, 128>}, {pipeline_mode = #tpu.pipeline_mode<synchronous>, transform_indices = @transform_11, window_bounds = array<i64: 128, 256>}, {pipeline_mode = #tpu.pipeline_mode<synchronous>, transform_indices = @transform_12, window_bounds = array<i64: 1, 256>}, {pipeline_mode = #tpu.pipeline_mode<synchronous>, transform_indices = @transform_13, window_bounds = array<i64: 256, 128>}, {pipeline_mode = #tpu.pipeline_mode<synchronous>, transform_indices = @transform_14, window_bounds = array<i64: 128, 128>}, {pipeline_mode = #tpu.pipeline_mode<synchronous>, transform_indices = @transform_15, window_bounds = array<i64: 1, 128>}, {transform_indices = @transform_16, window_bounds = array<i64: 1, 64, 128>}]} {
    %c0 = arith.constant 0 : index
    %c0_0 = arith.constant 0 : index
    %c0_1 = arith.constant 0 : index
    %0 = vector.load %arg2[%c0, %c0_0, %c0_1] : memref<1x64x3xf32, #tpu.memory_space<vmem>>, vector<1x64x3xf32>
    %1 = vector.shape_cast %0 : vector<1x64x3xf32> to vector<64x3xf32>
    %2 = vector.extract_strided_slice %1 {offsets = [0, 0], sizes = [64, 1], strides = [1, 1]} : vector<64x3xf32> to vector<64x1xf32>
    %c0_2 = arith.constant 0 : index
    %c0_3 = arith.constant 0 : index
    %3 = vector.load %arg4[%c0_2, %c0_3] : memref<3x128xf32, #tpu.memory_space<vmem>>, vector<1x128xf32>
    %4 = vector.broadcast %2 : vector<64x1xf32> to vector<64x128xf32>
    %5 = vector.broadcast %3 : vector<1x128xf32> to vector<64x128xf32>
    %6 = arith.mulf %4, %5 : vector<64x128xf32>
    %7 = vector.extract_strided_slice %1 {offsets = [0, 1], sizes = [64, 1], strides = [1, 1]} : vector<64x3xf32> to vector<64x1xf32>
    %c1 = arith.constant 1 : index
    %c0_4 = arith.constant 0 : index
    %8 = vector.load %arg4[%c1, %c0_4] : memref<3x128xf32, #tpu.memory_space<vmem>>, vector<1x128xf32>
    %9 = vector.broadcast %7 : vector<64x1xf32> to vector<64x128xf32>
    %10 = vector.broadcast %8 : vector<1x128xf32> to vector<64x128xf32>
    %11 = arith.mulf %9, %10 : vector<64x128xf32>
    %12 = arith.addf %6, %11 : vector<64x128xf32>
    %13 = vector.extract_strided_slice %1 {offsets = [0, 2], sizes = [64, 1], strides = [1, 1]} : vector<64x3xf32> to vector<64x1xf32>
    %c2 = arith.constant 2 : index
    %c0_5 = arith.constant 0 : index
    %14 = vector.load %arg4[%c2, %c0_5] : memref<3x128xf32, #tpu.memory_space<vmem>>, vector<1x128xf32>
    %15 = vector.broadcast %13 : vector<64x1xf32> to vector<64x128xf32>
    %16 = vector.broadcast %14 : vector<1x128xf32> to vector<64x128xf32>
    %17 = arith.mulf %15, %16 : vector<64x128xf32>
    %18 = arith.addf %12, %17 : vector<64x128xf32>
    %c0_6 = arith.constant 0 : index
    %c0_7 = arith.constant 0 : index
    %19 = vector.load %arg5[%c0_6, %c0_7] : memref<1x128xf32, #tpu.memory_space<vmem>>, vector<1x128xf32>
    %20 = vector.broadcast %19 : vector<1x128xf32> to vector<64x128xf32>
    %21 = arith.addf %18, %20 : vector<64x128xf32>
    %cst = arith.constant 0.000000e+00 : f32
    %22 = vector.broadcast %cst : f32 to vector<64x128xf32>
    %23 = arith.maximumf %21, %22 : vector<64x128xf32>
    %c0_8 = arith.constant 0 : index
    %c0_9 = arith.constant 0 : index
    %24 = vector.load %arg6[%c0_8, %c0_9] : memref<128x128xf32, #tpu.memory_space<vmem>>, vector<128x128xf32>
    %cst_10 = arith.constant dense<0.000000e+00> : vector<64x128xf32>
    %25 = tpu.matmul %23, %24, %cst_10 {dimension_numbers = #tpu.dot_dimension_numbers<[1], [0], [0], [1], [0, 0, 1, 1], [], []>} : vector<64x128xf32>, vector<128x128xf32>, vector<64x128xf32> -> vector<64x128xf32>
    %c0_11 = arith.constant 0 : index
    %c0_12 = arith.constant 0 : index
    %26 = vector.load %arg7[%c0_11, %c0_12] : memref<1x128xf32, #tpu.memory_space<vmem>>, vector<1x128xf32>
    %27 = vector.broadcast %26 : vector<1x128xf32> to vector<64x128xf32>
    %28 = arith.addf %25, %27 : vector<64x128xf32>
    %cst_13 = arith.constant 0.000000e+00 : f32
    %29 = vector.broadcast %cst_13 : f32 to vector<64x128xf32>
    %30 = arith.maximumf %28, %29 : vector<64x128xf32>
    %c0_14 = arith.constant 0 : index
    %c0_15 = arith.constant 0 : index
    %c0_16 = arith.constant 0 : index
    %31 = vector.load %arg3[%c0_14, %c0_15, %c0_16] : memref<1x64x3xf32, #tpu.memory_space<vmem>>, vector<1x64x3xf32>
    %32 = vector.shape_cast %31 : vector<1x64x3xf32> to vector<64x3xf32>
    %33 = vector.extract_strided_slice %32 {offsets = [0, 0], sizes = [64, 1], strides = [1, 1]} : vector<64x3xf32> to vector<64x1xf32>
    %c0_17 = arith.constant 0 : index
    %c0_18 = arith.constant 0 : index
    %34 = vector.load %arg4[%c0_17, %c0_18] : memref<3x128xf32, #tpu.memory_space<vmem>>, vector<1x128xf32>
    %35 = vector.broadcast %33 : vector<64x1xf32> to vector<64x128xf32>
    %36 = vector.broadcast %34 : vector<1x128xf32> to vector<64x128xf32>
    %37 = arith.mulf %35, %36 : vector<64x128xf32>
    %38 = vector.extract_strided_slice %32 {offsets = [0, 1], sizes = [64, 1], strides = [1, 1]} : vector<64x3xf32> to vector<64x1xf32>
    %c1_19 = arith.constant 1 : index
    %c0_20 = arith.constant 0 : index
    %39 = vector.load %arg4[%c1_19, %c0_20] : memref<3x128xf32, #tpu.memory_space<vmem>>, vector<1x128xf32>
    %40 = vector.broadcast %38 : vector<64x1xf32> to vector<64x128xf32>
    %41 = vector.broadcast %39 : vector<1x128xf32> to vector<64x128xf32>
    %42 = arith.mulf %40, %41 : vector<64x128xf32>
    %43 = arith.addf %37, %42 : vector<64x128xf32>
    %44 = vector.extract_strided_slice %32 {offsets = [0, 2], sizes = [64, 1], strides = [1, 1]} : vector<64x3xf32> to vector<64x1xf32>
    %c2_21 = arith.constant 2 : index
    %c0_22 = arith.constant 0 : index
    %45 = vector.load %arg4[%c2_21, %c0_22] : memref<3x128xf32, #tpu.memory_space<vmem>>, vector<1x128xf32>
    %46 = vector.broadcast %44 : vector<64x1xf32> to vector<64x128xf32>
    %47 = vector.broadcast %45 : vector<1x128xf32> to vector<64x128xf32>
    %48 = arith.mulf %46, %47 : vector<64x128xf32>
    %49 = arith.addf %43, %48 : vector<64x128xf32>
    %c0_23 = arith.constant 0 : index
    %c0_24 = arith.constant 0 : index
    %50 = vector.load %arg5[%c0_23, %c0_24] : memref<1x128xf32, #tpu.memory_space<vmem>>, vector<1x128xf32>
    %51 = vector.broadcast %50 : vector<1x128xf32> to vector<64x128xf32>
    %52 = arith.addf %49, %51 : vector<64x128xf32>
    %cst_25 = arith.constant 0.000000e+00 : f32
    %53 = vector.broadcast %cst_25 : f32 to vector<64x128xf32>
    %54 = arith.maximumf %52, %53 : vector<64x128xf32>
    %c0_26 = arith.constant 0 : index
    %c0_27 = arith.constant 0 : index
    %55 = vector.load %arg6[%c0_26, %c0_27] : memref<128x128xf32, #tpu.memory_space<vmem>>, vector<128x128xf32>
    %cst_28 = arith.constant dense<0.000000e+00> : vector<64x128xf32>
    %56 = tpu.matmul %54, %55, %cst_28 {dimension_numbers = #tpu.dot_dimension_numbers<[1], [0], [0], [1], [0, 0, 1, 1], [], []>} : vector<64x128xf32>, vector<128x128xf32>, vector<64x128xf32> -> vector<64x128xf32>
    %c0_29 = arith.constant 0 : index
    %c0_30 = arith.constant 0 : index
    %57 = vector.load %arg7[%c0_29, %c0_30] : memref<1x128xf32, #tpu.memory_space<vmem>>, vector<1x128xf32>
    %58 = vector.broadcast %57 : vector<1x128xf32> to vector<64x128xf32>
    %59 = arith.addf %56, %58 : vector<64x128xf32>
    %cst_31 = arith.constant 0.000000e+00 : f32
    %60 = vector.broadcast %cst_31 : f32 to vector<64x128xf32>
    %61 = arith.maximumf %59, %60 : vector<64x128xf32>
    %c0_32 = arith.constant 0 : index
    %c0_33 = arith.constant 0 : index
    %62 = vector.load %arg8[%c0_32, %c0_33] : memref<128x256xf32, #tpu.memory_space<vmem>>, vector<128x256xf32>
    %cst_34 = arith.constant dense<0.000000e+00> : vector<64x256xf32>
    %63 = tpu.matmul %30, %62, %cst_34 {dimension_numbers = #tpu.dot_dimension_numbers<[1], [0], [0], [1], [0, 0, 1, 1], [], []>} : vector<64x128xf32>, vector<128x256xf32>, vector<64x256xf32> -> vector<64x256xf32>
    %c0_35 = arith.constant 0 : index
    %c0_36 = arith.constant 0 : index
    %64 = vector.load %arg9[%c0_35, %c0_36] : memref<1x256xf32, #tpu.memory_space<vmem>>, vector<1x256xf32>
    %65 = vector.broadcast %64 : vector<1x256xf32> to vector<64x256xf32>
    %66 = arith.addf %63, %65 : vector<64x256xf32>
    %cst_37 = arith.constant 0.000000e+00 : f32
    %67 = vector.broadcast %cst_37 : f32 to vector<64x256xf32>
    %68 = arith.maximumf %66, %67 : vector<64x256xf32>
    %c0_38 = arith.constant 0 : index
    %c0_39 = arith.constant 0 : index
    %69 = vector.load %arg10[%c0_38, %c0_39] : memref<256x128xf32, #tpu.memory_space<vmem>>, vector<256x128xf32>
    %cst_40 = arith.constant dense<0.000000e+00> : vector<64x128xf32>
    %70 = tpu.matmul %68, %69, %cst_40 {dimension_numbers = #tpu.dot_dimension_numbers<[1], [0], [0], [1], [0, 0, 1, 1], [], []>} : vector<64x256xf32>, vector<256x128xf32>, vector<64x128xf32> -> vector<64x128xf32>
    %c0_41 = arith.constant 0 : index
    %c0_42 = arith.constant 0 : index
    %71 = vector.load %arg11[%c0_41, %c0_42] : memref<128x128xf32, #tpu.memory_space<vmem>>, vector<128x128xf32>
    %cst_43 = arith.constant dense<0.000000e+00> : vector<64x128xf32>
    %72 = tpu.matmul %30, %71, %cst_43 {dimension_numbers = #tpu.dot_dimension_numbers<[1], [0], [0], [1], [0, 0, 1, 1], [], []>} : vector<64x128xf32>, vector<128x128xf32>, vector<64x128xf32> -> vector<64x128xf32>
    %73 = arith.addf %70, %72 : vector<64x128xf32>
    %c0_44 = arith.constant 0 : index
    %c0_45 = arith.constant 0 : index
    %74 = vector.load %arg12[%c0_44, %c0_45] : memref<1x128xf32, #tpu.memory_space<vmem>>, vector<1x128xf32>
    %75 = vector.broadcast %74 : vector<1x128xf32> to vector<64x128xf32>
    %76 = arith.addf %73, %75 : vector<64x128xf32>
    %cst_46 = arith.constant dense<0xFF800000> : vector<64xf32>
    %77 = vector.multi_reduction <maximumf>, %76, %cst_46 [1] : vector<64x128xf32> to vector<64xf32>
    %78 = vector.shape_cast %77 : vector<64xf32> to vector<64x1xf32>
    %79 = vector.broadcast %78 : vector<64x1xf32> to vector<64x128xf32>
    %80 = arith.subf %76, %79 : vector<64x128xf32>
    %81 = math.exp %80 : vector<64x128xf32>
    %cst_47 = arith.constant dense<0.000000e+00> : vector<64xf32>
    %82 = vector.multi_reduction <add>, %81, %cst_47 [1] : vector<64x128xf32> to vector<64xf32>
    %83 = vector.shape_cast %82 : vector<64xf32> to vector<64x1xf32>
    %84 = math.log %83 : vector<64x1xf32>
    %85 = vector.broadcast %84 : vector<64x1xf32> to vector<64x128xf32>
    %86 = arith.subf %80, %85 : vector<64x128xf32>
    %c0_48 = arith.constant 0 : index
    %c0_49 = arith.constant 0 : index
    %87 = vector.load %arg13[%c0_48, %c0_49] : memref<128x256xf32, #tpu.memory_space<vmem>>, vector<128x256xf32>
    %cst_50 = arith.constant dense<0.000000e+00> : vector<64x256xf32>
    %88 = tpu.matmul %61, %87, %cst_50 {dimension_numbers = #tpu.dot_dimension_numbers<[1], [0], [0], [1], [0, 0, 1, 1], [], []>} : vector<64x128xf32>, vector<128x256xf32>, vector<64x256xf32> -> vector<64x256xf32>
    %c0_51 = arith.constant 0 : index
    %c0_52 = arith.constant 0 : index
    %89 = vector.load %arg14[%c0_51, %c0_52] : memref<1x256xf32, #tpu.memory_space<vmem>>, vector<1x256xf32>
    %90 = vector.broadcast %89 : vector<1x256xf32> to vector<64x256xf32>
    %91 = arith.addf %88, %90 : vector<64x256xf32>
    %cst_53 = arith.constant 0.000000e+00 : f32
    %92 = vector.broadcast %cst_53 : f32 to vector<64x256xf32>
    %93 = arith.maximumf %91, %92 : vector<64x256xf32>
    %c0_54 = arith.constant 0 : index
    %c0_55 = arith.constant 0 : index
    %94 = vector.load %arg15[%c0_54, %c0_55] : memref<256x128xf32, #tpu.memory_space<vmem>>, vector<256x128xf32>
    %cst_56 = arith.constant dense<0.000000e+00> : vector<64x128xf32>
    %95 = tpu.matmul %93, %94, %cst_56 {dimension_numbers = #tpu.dot_dimension_numbers<[1], [0], [0], [1], [0, 0, 1, 1], [], []>} : vector<64x256xf32>, vector<256x128xf32>, vector<64x128xf32> -> vector<64x128xf32>
    %c0_57 = arith.constant 0 : index
    %c0_58 = arith.constant 0 : index
    %96 = vector.load %arg16[%c0_57, %c0_58] : memref<128x128xf32, #tpu.memory_space<vmem>>, vector<128x128xf32>
    %cst_59 = arith.constant dense<0.000000e+00> : vector<64x128xf32>
    %97 = tpu.matmul %61, %96, %cst_59 {dimension_numbers = #tpu.dot_dimension_numbers<[1], [0], [0], [1], [0, 0, 1, 1], [], []>} : vector<64x128xf32>, vector<128x128xf32>, vector<64x128xf32> -> vector<64x128xf32>
    %98 = arith.addf %95, %97 : vector<64x128xf32>
    %c0_60 = arith.constant 0 : index
    %c0_61 = arith.constant 0 : index
    %99 = vector.load %arg17[%c0_60, %c0_61] : memref<1x128xf32, #tpu.memory_space<vmem>>, vector<1x128xf32>
    %100 = vector.broadcast %99 : vector<1x128xf32> to vector<64x128xf32>
    %101 = arith.addf %98, %100 : vector<64x128xf32>
    %cst_62 = arith.constant dense<0xFF800000> : vector<64xf32>
    %102 = vector.multi_reduction <maximumf>, %101, %cst_62 [1] : vector<64x128xf32> to vector<64xf32>
    %103 = vector.shape_cast %102 : vector<64xf32> to vector<64x1xf32>
    %104 = vector.broadcast %103 : vector<64x1xf32> to vector<64x128xf32>
    %105 = arith.subf %101, %104 : vector<64x128xf32>
    %106 = math.exp %105 : vector<64x128xf32>
    %cst_63 = arith.constant dense<0.000000e+00> : vector<64xf32>
    %107 = vector.multi_reduction <add>, %106, %cst_63 [1] : vector<64x128xf32> to vector<64xf32>
    %108 = vector.shape_cast %107 : vector<64xf32> to vector<64x1xf32>
    %109 = math.log %108 : vector<64x1xf32>
    %110 = vector.broadcast %109 : vector<64x1xf32> to vector<64x128xf32>
    %111 = arith.subf %105, %110 : vector<64x128xf32>
    %112 = arith.maximumf %86, %111 : vector<64x128xf32>
    %c0_64 = arith.constant 0 : index
    %c0_65 = arith.constant 0 : index
    %c0_66 = arith.constant 0 : index
    %113 = vector.load %arg18[%c0_64, %c0_65, %c0_66] : memref<1x64x128xf32, #tpu.memory_space<vmem>>, vector<1x64x128xf32>
    %114 = vector.shape_cast %113 : vector<1x64x128xf32> to vector<64x128xf32>
    %115 = vector.shape_cast %112 : vector<64x128xf32> to vector<1x64x128xf32>
    tpu.vector_store %arg18[%c0_64, %c0_65, %c0_66], %115 {strides = array<i32>} : memref<1x64x128xf32, #tpu.memory_space<vmem>>, vector<1x64x128xf32>,
    return
  }
  func.func @transform_0(%arg0: i32, %arg1: i32) -> (i32, i32, i32) {
    %c0_i32 = arith.constant 0 : i32
    %c0_i32_0 = arith.constant 0 : i32
    return %arg0, %arg1, %c0_i32 : i32, i32, i32
  }
  func.func @transform_1(%arg0: i32, %arg1: i32) -> (i32, i32, i32) {
    %c0_i32 = arith.constant 0 : i32
    %c0_i32_0 = arith.constant 0 : i32
    return %arg0, %arg1, %c0_i32 : i32, i32, i32
  }
  func.func @transform_2(%arg0: i32, %arg1: i32) -> (i32, i32) {
    %c0_i32 = arith.constant 0 : i32
    %c0_i32_0 = arith.constant 0 : i32
    %c0_i32_1 = arith.constant 0 : i32
    return %c0_i32, %c0_i32_0 : i32, i32
  }
  func.func @transform_3(%arg0: i32, %arg1: i32) -> (i32, i32) {
    %c0_i32 = arith.constant 0 : i32
    %c0_i32_0 = arith.constant 0 : i32
    %c0_i32_1 = arith.constant 0 : i32
    return %c0_i32, %c0_i32_0 : i32, i32
  }
  func.func @transform_4(%arg0: i32, %arg1: i32) -> (i32, i32) {
    %c0_i32 = arith.constant 0 : i32
    %c0_i32_0 = arith.constant 0 : i32
    %c0_i32_1 = arith.constant 0 : i32
    return %c0_i32, %c0_i32_0 : i32, i32
  }
  func.func @transform_5(%arg0: i32, %arg1: i32) -> (i32, i32) {
    %c0_i32 = arith.constant 0 : i32
    %c0_i32_0 = arith.constant 0 : i32
    %c0_i32_1 = arith.constant 0 : i32
    return %c0_i32, %c0_i32_0 : i32, i32
  }
  func.func @transform_6(%arg0: i32, %arg1: i32) -> (i32, i32) {
    %c0_i32 = arith.constant 0 : i32
    %c0_i32_0 = arith.constant 0 : i32
    %c0_i32_1 = arith.constant 0 : i32
    return %c0_i32, %c0_i32_0 : i32, i32
  }
  func.func @transform_7(%arg0: i32, %arg1: i32) -> (i32, i32) {
    %c0_i32 = arith.constant 0 : i32
    %c0_i32_0 = arith.constant 0 : i32
    %c0_i32_1 = arith.constant 0 : i32
    return %c0_i32, %c0_i32_0 : i32, i32
  }
  func.func @transform_8(%arg0: i32, %arg1: i32) -> (i32, i32) {
    %c0_i32 = arith.constant 0 : i32
    %c0_i32_0 = arith.constant 0 : i32
    %c0_i32_1 = arith.constant 0 : i32
    return %c0_i32, %c0_i32_0 : i32, i32
  }
  func.func @transform_9(%arg0: i32, %arg1: i32) -> (i32, i32) {
    %c0_i32 = arith.constant 0 : i32
    %c0_i32_0 = arith.constant 0 : i32
    %c0_i32_1 = arith.constant 0 : i32
    return %c0_i32, %c0_i32_0 : i32, i32
  }
  func.func @transform_10(%arg0: i32, %arg1: i32) -> (i32, i32) {
    %c0_i32 = arith.constant 0 : i32
    %c0_i32_0 = arith.constant 0 : i32
    %c0_i32_1 = arith.constant 0 : i32
    return %c0_i32, %c0_i32_0 : i32, i32
  }
  func.func @transform_11(%arg0: i32, %arg1: i32) -> (i32, i32) {
    %c0_i32 = arith.constant 0 : i32
    %c0_i32_0 = arith.constant 0 : i32
    %c0_i32_1 = arith.constant 0 : i32
    return %c0_i32, %c0_i32_0 : i32, i32
  }
  func.func @transform_12(%arg0: i32, %arg1: i32) -> (i32, i32) {
    %c0_i32 = arith.constant 0 : i32
    %c0_i32_0 = arith.constant 0 : i32
    %c0_i32_1 = arith.constant 0 : i32
    return %c0_i32, %c0_i32_0 : i32, i32
  }
  func.func @transform_13(%arg0: i32, %arg1: i32) -> (i32, i32) {
    %c0_i32 = arith.constant 0 : i32
    %c0_i32_0 = arith.constant 0 : i32
    %c0_i32_1 = arith.constant 0 : i32
    return %c0_i32, %c0_i32_0 : i32, i32
  }
  func.func @transform_14(%arg0: i32, %arg1: i32) -> (i32, i32) {
    %c0_i32 = arith.constant 0 : i32
    %c0_i32_0 = arith.constant 0 : i32
    %c0_i32_1 = arith.constant 0 : i32
    return %c0_i32, %c0_i32_0 : i32, i32
  }
  func.func @transform_15(%arg0: i32, %arg1: i32) -> (i32, i32) {
    %c0_i32 = arith.constant 0 : i32
    %c0_i32_0 = arith.constant 0 : i32
    %c0_i32_1 = arith.constant 0 : i32
    return %c0_i32, %c0_i32_0 : i32, i32
  }
  func.func @transform_16(%arg0: i32, %arg1: i32) -> (i32, i32, i32) {
    %c0_i32 = arith.constant 0 : i32
    %c0_i32_0 = arith.constant 0 : i32
    return %arg0, %arg1, %c0_i32 : i32, i32, i32
  }
}

</mosaic_0001>

<llo_original>
// kernel: tpu_custom_call.1
$region0: #{tpu_custom_call.1}
  #allocation0 [shape = 'u32[]', space=smem, size = 0x4, offset = 0x4, fixed_abs, tag = 'smem constant byte address 0x4 - core index']
  #allocation1 [shape = 'u32[144,128]{1,0:T(1,128)}', space=vmem, size = 0x12000, scoped, tag = 'internal scratch']
  %s0 = inlined_call_operand.vmem [shape: f32[2,64,3], index: 0, kind: input, shape index: {}]
  %s1 = inlined_call_operand.vmem [shape: f32[2,64,3], index: 1, kind: input, shape index: {}]
  %s2 = inlined_call_operand.vmem [shape: f32[3,128], index: 2, kind: input, shape index: {}]
  %s3 = inlined_call_operand.vmem [shape: f32[1,128], index: 3, kind: input, shape index: {}]
  %s4 = inlined_call_operand.hbm [shape: f32[128,128], index: 4, kind: input, shape index: {}]
  %s5 = inlined_call_operand.vmem [shape: f32[1,128], index: 5, kind: input, shape index: {}]
  %s6 = inlined_call_operand.vmem [shape: f32[128,256], index: 6, kind: input, shape index: {}]
  %s7 = inlined_call_operand.vmem [shape: f32[1,256], index: 7, kind: input, shape index: {}]
  %s8 = inlined_call_operand.hbm [shape: f32[256,128], index: 8, kind: input, shape index: {}]
  %s9 = inlined_call_operand.hbm [shape: f32[128,128], index: 9, kind: input, shape index: {}]
  %s10 = inlined_call_operand.vmem [shape: f32[1,128], index: 10, kind: input, shape index: {}]
  %s11 = inlined_call_operand.hbm [shape: f32[128,256], index: 11, kind: input, shape index: {}]
  %s12 = inlined_call_operand.vmem [shape: f32[1,256], index: 12, kind: input, shape index: {}]
  %s13 = inlined_call_operand.hbm [shape: f32[256,128], index: 13, kind: input, shape index: {}]
  %s14 = inlined_call_operand.hbm [shape: f32[128,128], index: 14, kind: input, shape index: {}]
  %s15 = inlined_call_operand.vmem [shape: f32[1,128], index: 15, kind: input, shape index: {}]
  %s16 = inlined_call_operand.hbm [shape: f32[2,64,128], index: 16, kind: output, shape index: {}]
  %s17 = sld [smem:[#allocation0]]
  $region121: #{tpu_custom_call.1} parent=0
    _
  %s19 = ssub.s32 1, %s17
  %s20 = scalar_select 0, %s19, %s17
  $region1: #{tpu_custom_call.1} parent=0
    #allocation2 [shape = 'u8[65536]{0}', space=vmem, size = 0x10000, scoped, tag = 'input window, operand 4, single buffered']
    #allocation3 [shape = 's32[2]{0}', space=sflag, size = 0x8, scoped, tag = 'scoped memory for tpu_custom_call.1']
    #allocation4 [shape = 's32[2]{0}', space=sflag, size = 0x8, scoped, tag = 'scoped memory for tpu_custom_call.1']
    #allocation5 [shape = 'u8[131072]{0}', space=vmem, size = 0x20000, scoped, tag = 'input window, operand 8, single buffered']
    #allocation6 [shape = 's32[1]{0}', space=sflag, size = 0x4, scoped, tag = 'scoped memory for tpu_custom_call.1']
    #allocation7 [shape = 'u8[65536]{0}', space=vmem, size = 0x10000, scoped, tag = 'input window, operand 9, single buffered']
    #allocation8 [shape = 'u8[131072]{0}', space=vmem, size = 0x20000, scoped, tag = 'input window, operand 11, single buffered']
    #allocation9 [shape = 's32[1]{0}', space=sflag, size = 0x4, scoped, tag = 'scoped memory for tpu_custom_call.1']
    #allocation10 [shape = 'u8[131072]{0}', space=vmem, size = 0x20000, scoped, tag = 'input window, operand 13, single buffered']
    #allocation11 [shape = 'u8[65536]{0}', space=vmem, size = 0x10000, scoped, tag = 'input window, operand 14, single buffered']
    #allocation12 [shape = 's32[1]{0}', space=sflag, size = 0x4, scoped, tag = 'scoped memory for tpu_custom_call.1']
    #allocation13 [shape = 'u8[65536]{0}', space=vmem, size = 0x10000, scoped, tag = 'output window, operand 0']
    %21 = vsyncpa [#allocation3], 0
    %22 = vsyncpa [#allocation6], 0
    %23 = vsyncpa [#allocation9], 0
    %24 = vsyncpa [#allocation12], 0
    %25 = vsyncpa [#allocation4], 0
    %s26 = scalar_lea.sflag [#allocation4], 1
    %27 = vsyncpa %s26, 0
    loop: start=0, step=1, limit=4
    $region2: #{tpu_custom_call.1} parent=1 // loop_pre_header
      _
    $region3: #{tpu_custom_call.1} parent=1 // loop_header
      %s29 = sphi 0, %s33
      %p30 = scmp.ge.s32.totalorder %s29, 4
      %s36 = sphi 0, %s48
      %s37 = sphi 0, %s44
      %s38 = sphi 0, %s36
      %s39 = sphi 0, %s37
      %s40 = sphi 0, %s38
      %s41 = sphi 0, %s39
      %s53 = sphi 0, %s55
      %s56 = sphi 0, %s53
      %s57 = sphi 0, %s56
      %s73 = sphi 0, %s57
      %s81 = sphi 0, %s83
      %s84 = sphi 0, %s81
      %s85 = sphi 0, %s84
      %s101 = sphi 0, %s85
      %s105 = sphi 0, %s105
      %s107 = sphi 0, %s105
      %s108 = sphi 0, %s107
      %s122 = sphi 0, %s108
      %s126 = sphi 0, %s126
      %s128 = sphi 0, %s126
      %s129 = sphi 0, %s128
      %s143 = sphi 0, %s129
      %s147 = sphi 0, %s147
      %s149 = sphi 0, %s147
      %s150 = sphi 0, %s149
      %s164 = sphi 0, %s150
      %s168 = sphi 0, %s168
      %s170 = sphi 0, %s168
      %s171 = sphi 0, %s170
      %s185 = sphi 0, %s171
      %s189 = sphi 0, %s189
      %s191 = sphi 0, %s189
      %s192 = sphi 0, %s191
      %s206 = sphi 0, %s192
      %s210 = sphi 0, %s210
      %s212 = sphi 0, %s210
      %s213 = sphi 0, %s212
      %s227 = sphi 0, %s213
      %s231 = sphi 0, %s231
      %s233 = sphi 0, %s231
      %s234 = sphi 0, %s233
      %s248 = sphi 0, %s234
      %s252 = sphi 0, %s252
      %s254 = sphi 0, %s252
      %s255 = sphi 0, %s254
      %s269 = sphi 0, %s255
      %s273 = sphi 0, %s273
      %s275 = sphi 0, %s273
      %s276 = sphi 0, %s275
      %s290 = sphi 0, %s276
      %s294 = sphi 0, %s294
      %s296 = sphi 0, %s294
      %s297 = sphi 0, %s296
      %s311 = sphi 0, %s297
      %s315 = sphi 0, %s315
      %s317 = sphi 0, %s315
      %s318 = sphi 0, %s317
      %s332 = sphi 0, %s318
      %s336 = sphi 0, %s336
      %s338 = sphi 0, %s336
      %s339 = sphi 0, %s338
      %s353 = sphi 0, %s339
      %s357 = sphi 0, %s357
      %s359 = sphi 0, %s357
      %s360 = sphi 0, %s359
      %s374 = sphi 0, %s360
      %s378 = sphi 0, %s378
      %s380 = sphi 0, %s378
      %s381 = sphi 0, %s380
      %s395 = sphi 0, %s381
      %s403 = sphi 0, %s405
      %s406 = sphi 0, %s403
      %s407 = sphi 0, %s406
      %s423 = sphi 0, %s407
    $region4: #{tpu_custom_call.1} parent=1 // loop_header_branch
      %32 = sbr.rel (%p30) target = $region8
    $region5: #{tpu_custom_call.1} parent=1 // loop_body
      %s34 = ssub.s32 %s29, 1
      %s35 = ssub.s32 %s29, 2
      %s42 = sadd.s32 1, %s37
      %p43 = scmp.ge.s32.totalorder %s42, 1
      %s44 = scalar_select %p43, 0, %s42
      %s45 = sadd.s32 1, %s36
      %s46 = scalar_select %p43, %s45, %s36
      %p47 = scmp.ge.s32.totalorder %s46, 2
      %s48 = scalar_select %p47, 0, %s46
      %s49 = ssub.s32 %s36, %s48
      %s50 = ssub.s32 %s37, %s44
      %s51 = sor.u32 %s49, %s50
      %p52 = scmp.eq.s32.totalorder %s51, 0
      %s54 = sadd.s32 %s53, 1
      %s55 = scalar_select %p52, %s53, %s54
      %p58 = pneg %p52
      %p59 = scmp.eq.s32.totalorder %s29, 1
      %p60 = por %p58, %p59
      %p61 = scmp.ne.s32.totalorder %s53, %s56
      %p62 = scmp.eq.s32.totalorder %s29, 0
      %p63 = por %p61, %p62
      %p64 = scmp.ne.s32.totalorder %s53, %s56
      %p65 = scmp.eq.s32.totalorder %s34, 1
      %p66 = por %p64, %p65
      %p67 = scmp.ne.s32.totalorder %s56, %s57
      %p68 = scmp.eq.s32.totalorder %s34, 0
      %p69 = por %p67, %p68
      %p70 = scmp.ne.s32.totalorder %s56, %s57
      %p71 = scmp.eq.s32.totalorder %s35, 1
      %p72 = por %p70, %p71
      %p74 = scmp.ne.s32.totalorder %s57, %s73
      %p75 = scmp.eq.s32.totalorder %s35, 0
      %p76 = por %p74, %p75
      %s77 = ssub.s32 %s36, %s48
      %s78 = ssub.s32 %s37, %s44
      %s79 = sor.u32 %s77, %s78
      %p80 = scmp.eq.s32.totalorder %s79, 0
      %s82 = sadd.s32 %s81, 1
      %s83 = scalar_select %p80, %s81, %s82
      %p86 = pneg %p80
      %p87 = scmp.eq.s32.totalorder %s29, 1
      %p88 = por %p86, %p87
      %p89 = scmp.ne.s32.totalorder %s81, %s84
      %p90 = scmp.eq.s32.totalorder %s29, 0
      %p91 = por %p89, %p90
      %p92 = scmp.ne.s32.totalorder %s81, %s84
      %p93 = scmp.eq.s32.totalorder %s34, 1
      %p94 = por %p92, %p93
      %p95 = scmp.ne.s32.totalorder %s84, %s85
      %p96 = scmp.eq.s32.totalorder %s34, 0
      %p97 = por %p95, %p96
      %p98 = scmp.ne.s32.totalorder %s84, %s85
      %p99 = scmp.eq.s32.totalorder %s35, 1
      %p100 = por %p98, %p99
      %p102 = scmp.ne.s32.totalorder %s85, %s101
      %p103 = scmp.eq.s32.totalorder %s35, 0
      %p104 = por %p102, %p103
      %s106 = sadd.s32 %s105, 1
      %p109 = scmp.eq.s32.totalorder %s29, 1
      %p110 = scmp.ne.s32.totalorder %s105, %s107
      %p111 = scmp.eq.s32.totalorder %s29, 0
      %p112 = por %p110, %p111
      %p113 = scmp.ne.s32.totalorder %s105, %s107
      %p114 = scmp.eq.s32.totalorder %s34, 1
      %p115 = por %p113, %p114
      %p116 = scmp.ne.s32.totalorder %s107, %s108
      %p117 = scmp.eq.s32.totalorder %s34, 0
      %p118 = por %p116, %p117
      %p119 = scmp.ne.s32.totalorder %s107, %s108
      %p120 = scmp.eq.s32.totalorder %s35, 1
      %p121 = por %p119, %p120
      %p123 = scmp.ne.s32.totalorder %s108, %s122
      %p124 = scmp.eq.s32.totalorder %s35, 0
      %p125 = por %p123, %p124
      %s127 = sadd.s32 %s126, 1
      %p130 = scmp.eq.s32.totalorder %s29, 1
      %p131 = scmp.ne.s32.totalorder %s126, %s128
      %p132 = scmp.eq.s32.totalorder %s29, 0
      %p133 = por %p131, %p132
      %p134 = scmp.ne.s32.totalorder %s126, %s128
      %p135 = scmp.eq.s32.totalorder %s34, 1
      %p136 = por %p134, %p135
      %p137 = scmp.ne.s32.totalorder %s128, %s129
      %p138 = scmp.eq.s32.totalorder %s34, 0
      %p139 = por %p137, %p138
      %p140 = scmp.ne.s32.totalorder %s128, %s129
      %p141 = scmp.eq.s32.totalorder %s35, 1
      %p142 = por %p140, %p141
      %p144 = scmp.ne.s32.totalorder %s129, %s143
      %p145 = scmp.eq.s32.totalorder %s35, 0
      %p146 = por %p144, %p145
      %s148 = sadd.s32 %s147, 1
      %p151 = scmp.eq.s32.totalorder %s29, 1
      %p152 = scmp.ne.s32.totalorder %s147, %s149
      %p153 = scmp.eq.s32.totalorder %s29, 0
      %p154 = por %p152, %p153
      %p155 = scmp.ne.s32.totalorder %s147, %s149
      %p156 = scmp.eq.s32.totalorder %s34, 1
      %p157 = por %p155, %p156
      %p158 = scmp.ne.s32.totalorder %s149, %s150
      %p159 = scmp.eq.s32.totalorder %s34, 0
      %p160 = por %p158, %p159
      %p161 = scmp.ne.s32.totalorder %s149, %s150
      %p162 = scmp.eq.s32.totalorder %s35, 1
      %p163 = por %p161, %p162
      %p165 = scmp.ne.s32.totalorder %s150, %s164
      %p166 = scmp.eq.s32.totalorder %s35, 0
      %p167 = por %p165, %p166
      %s169 = sadd.s32 %s168, 1
      %p172 = scmp.eq.s32.totalorder %s29, 1
      %p173 = scmp.ne.s32.totalorder %s168, %s170
      %p174 = scmp.eq.s32.totalorder %s29, 0
      %p175 = por %p173, %p174
      %p176 = scmp.ne.s32.totalorder %s168, %s170
      %p177 = scmp.eq.s32.totalorder %s34, 1
      %p178 = por %p176, %p177
      %p179 = scmp.ne.s32.totalorder %s170, %s171
      %p180 = scmp.eq.s32.totalorder %s34, 0
      %p181 = por %p179, %p180
      %p182 = scmp.ne.s32.totalorder %s170, %s171
      %p183 = scmp.eq.s32.totalorder %s35, 1
      %p184 = por %p182, %p183
      %p186 = scmp.ne.s32.totalorder %s171, %s185
      %p187 = scmp.eq.s32.totalorder %s35, 0
      %p188 = por %p186, %p187
      %s190 = sadd.s32 %s189, 1
      %p193 = scmp.eq.s32.totalorder %s29, 1
      %p194 = scmp.ne.s32.totalorder %s189, %s191
      %p195 = scmp.eq.s32.totalorder %s29, 0
      %p196 = por %p194, %p195
      %p197 = scmp.ne.s32.totalorder %s189, %s191
      %p198 = scmp.eq.s32.totalorder %s34, 1
      %p199 = por %p197, %p198
      %p200 = scmp.ne.s32.totalorder %s191, %s192
      %p201 = scmp.eq.s32.totalorder %s34, 0
      %p202 = por %p200, %p201
      %p203 = scmp.ne.s32.totalorder %s191, %s192
      %p204 = scmp.eq.s32.totalorder %s35, 1
      %p205 = por %p203, %p204
      %p207 = scmp.ne.s32.totalorder %s192, %s206
      %p208 = scmp.eq.s32.totalorder %s35, 0
      %p209 = por %p207, %p208
      %s211 = sadd.s32 %s210, 1
      %p214 = scmp.eq.s32.totalorder %s29, 1
      %p215 = scmp.ne.s32.totalorder %s210, %s212
      %p216 = scmp.eq.s32.totalorder %s29, 0
      %p217 = por %p215, %p216
      %p218 = scmp.ne.s32.totalorder %s210, %s212
      %p219 = scmp.eq.s32.totalorder %s34, 1
      %p220 = por %p218, %p219
      %p221 = scmp.ne.s32.totalorder %s212, %s213
      %p222 = scmp.eq.s32.totalorder %s34, 0
      %p223 = por %p221, %p222
      %p224 = scmp.ne.s32.totalorder %s212, %s213
      %p225 = scmp.eq.s32.totalorder %s35, 1
      %p226 = por %p224, %p225
      %p228 = scmp.ne.s32.totalorder %s213, %s227
      %p229 = scmp.eq.s32.totalorder %s35, 0
      %p230 = por %p228, %p229
      %s232 = sadd.s32 %s231, 1
      %p235 = scmp.eq.s32.totalorder %s29, 1
      %p236 = scmp.ne.s32.totalorder %s231, %s233
      %p237 = scmp.eq.s32.totalorder %s29, 0
      %p238 = por %p236, %p237
      %p239 = scmp.ne.s32.totalorder %s231, %s233
      %p240 = scmp.eq.s32.totalorder %s34, 1
      %p241 = por %p239, %p240
      %p242 = scmp.ne.s32.totalorder %s233, %s234
      %p243 = scmp.eq.s32.totalorder %s34, 0
      %p244 = por %p242, %p243
      %p245 = scmp.ne.s32.totalorder %s233, %s234
      %p246 = scmp.eq.s32.totalorder %s35, 1
      %p247 = por %p245, %p246
      %p249 = scmp.ne.s32.totalorder %s234, %s248
      %p250 = scmp.eq.s32.totalorder %s35, 0
      %p251 = por %p249, %p250
      %s253 = sadd.s32 %s252, 1
      %p256 = scmp.eq.s32.totalorder %s29, 1
      %p257 = scmp.ne.s32.totalorder %s252, %s254
      %p258 = scmp.eq.s32.totalorder %s29, 0
      %p259 = por %p257, %p258
      %p260 = scmp.ne.s32.totalorder %s252, %s254
      %p261 = scmp.eq.s32.totalorder %s34, 1
      %p262 = por %p260, %p261
      %p263 = scmp.ne.s32.totalorder %s254, %s255
      %p264 = scmp.eq.s32.totalorder %s34, 0
      %p265 = por %p263, %p264
      %p266 = scmp.ne.s32.totalorder %s254, %s255
      %p267 = scmp.eq.s32.totalorder %s35, 1
      %p268 = por %p266, %p267
      %p270 = scmp.ne.s32.totalorder %s255, %s269
      %p271 = scmp.eq.s32.totalorder %s35, 0
      %p272 = por %p270, %p271
      %s274 = sadd.s32 %s273, 1
      %p277 = scmp.eq.s32.totalorder %s29, 1
      %p278 = scmp.ne.s32.totalorder %s273, %s275
      %p279 = scmp.eq.s32.totalorder %s29, 0
      %p280 = por %p278, %p279
      %p281 = scmp.ne.s32.totalorder %s273, %s275
      %p282 = scmp.eq.s32.totalorder %s34, 1
      %p283 = por %p281, %p282
      %p284 = scmp.ne.s32.totalorder %s275, %s276
      %p285 = scmp.eq.s32.totalorder %s34, 0
      %p286 = por %p284, %p285
      %p287 = scmp.ne.s32.totalorder %s275, %s276
      %p288 = scmp.eq.s32.totalorder %s35, 1
      %p289 = por %p287, %p288
      %p291 = scmp.ne.s32.totalorder %s276, %s290
      %p292 = scmp.eq.s32.totalorder %s35, 0
      %p293 = por %p291, %p292
      %s295 = sadd.s32 %s294, 1
      %p298 = scmp.eq.s32.totalorder %s29, 1
      %p299 = scmp.ne.s32.totalorder %s294, %s296
      %p300 = scmp.eq.s32.totalorder %s29, 0
      %p301 = por %p299, %p300
      %p302 = scmp.ne.s32.totalorder %s294, %s296
      %p303 = scmp.eq.s32.totalorder %s34, 1
      %p304 = por %p302, %p303
      %p305 = scmp.ne.s32.totalorder %s296, %s297
      %p306 = scmp.eq.s32.totalorder %s34, 0
      %p307 = por %p305, %p306
      %p308 = scmp.ne.s32.totalorder %s296, %s297
      %p309 = scmp.eq.s32.totalorder %s35, 1
      %p310 = por %p308, %p309
      %p312 = scmp.ne.s32.totalorder %s297, %s311
      %p313 = scmp.eq.s32.totalorder %s35, 0
      %p314 = por %p312, %p313
      %s316 = sadd.s32 %s315, 1
      %p319 = scmp.eq.s32.totalorder %s29, 1
      %p320 = scmp.ne.s32.totalorder %s315, %s317
      %p321 = scmp.eq.s32.totalorder %s29, 0
      %p322 = por %p320, %p321
      %p323 = scmp.ne.s32.totalorder %s315, %s317
      %p324 = scmp.eq.s32.totalorder %s34, 1
      %p325 = por %p323, %p324
      %p326 = scmp.ne.s32.totalorder %s317, %s318
      %p327 = scmp.eq.s32.totalorder %s34, 0
      %p328 = por %p326, %p327
      %p329 = scmp.ne.s32.totalorder %s317, %s318
      %p330 = scmp.eq.s32.totalorder %s35, 1
      %p331 = por %p329, %p330
      %p333 = scmp.ne.s32.totalorder %s318, %s332
      %p334 = scmp.eq.s32.totalorder %s35, 0
      %p335 = por %p333, %p334
      %s337 = sadd.s32 %s336, 1
      %p340 = scmp.eq.s32.totalorder %s29, 1
      %p341 = scmp.ne.s32.totalorder %s336, %s338
      %p342 = scmp.eq.s32.totalorder %s29, 0
      %p343 = por %p341, %p342
      %p344 = scmp.ne.s32.totalorder %s336, %s338
      %p345 = scmp.eq.s32.totalorder %s34, 1
      %p346 = por %p344, %p345
      %p347 = scmp.ne.s32.totalorder %s338, %s339
      %p348 = scmp.eq.s32.totalorder %s34, 0
      %p349 = por %p347, %p348
      %p350 = scmp.ne.s32.totalorder %s338, %s339
      %p351 = scmp.eq.s32.totalorder %s35, 1
      %p352 = por %p350, %p351
      %p354 = scmp.ne.s32.totalorder %s339, %s353
      %p355 = scmp.eq.s32.totalorder %s35, 0
      %p356 = por %p354, %p355
      %s358 = sadd.s32 %s357, 1
      %p361 = scmp.eq.s32.totalorder %s29, 1
      %p362 = scmp.ne.s32.totalorder %s357, %s359
      %p363 = scmp.eq.s32.totalorder %s29, 0
      %p364 = por %p362, %p363
      %p365 = scmp.ne.s32.totalorder %s357, %s359
      %p366 = scmp.eq.s32.totalorder %s34, 1
      %p367 = por %p365, %p366
      %p368 = scmp.ne.s32.totalorder %s359, %s360
      %p369 = scmp.eq.s32.totalorder %s34, 0
      %p370 = por %p368, %p369
      %p371 = scmp.ne.s32.totalorder %s359, %s360
      %p372 = scmp.eq.s32.totalorder %s35, 1
      %p373 = por %p371, %p372
      %p375 = scmp.ne.s32.totalorder %s360, %s374
      %p376 = scmp.eq.s32.totalorder %s35, 0
      %p377 = por %p375, %p376
      %s379 = sadd.s32 %s378, 1
      %p382 = scmp.eq.s32.totalorder %s29, 1
      %p383 = scmp.ne.s32.totalorder %s378, %s380
      %p384 = scmp.eq.s32.totalorder %s29, 0
      %p385 = por %p383, %p384
      %p386 = scmp.ne.s32.totalorder %s378, %s380
      %p387 = scmp.eq.s32.totalorder %s34, 1
      %p388 = por %p386, %p387
      %p389 = scmp.ne.s32.totalorder %s380, %s381
      %p390 = scmp.eq.s32.totalorder %s34, 0
      %p391 = por %p389, %p390
      %p392 = scmp.ne.s32.totalorder %s380, %s381
      %p393 = scmp.eq.s32.totalorder %s35, 1
      %p394 = por %p392, %p393
      %p396 = scmp.ne.s32.totalorder %s381, %s395
      %p397 = scmp.eq.s32.totalorder %s35, 0
      %p398 = por %p396, %p397
      %s399 = ssub.s32 %s36, %s48
      %s400 = ssub.s32 %s37, %s44
      %s401 = sor.u32 %s399, %s400
      %p402 = scmp.eq.s32.totalorder %s401, 0
      %s404 = sadd.s32 %s403, 1
      %s405 = scalar_select %p402, %s403, %s404
      %p408 = pneg %p402
      %p409 = scmp.eq.s32.totalorder %s29, 1
      %p410 = por %p408, %p409
      %p411 = scmp.ne.s32.totalorder %s403, %s406
      %p412 = scmp.eq.s32.totalorder %s29, 0
      %p413 = por %p411, %p412
      %p414 = scmp.ne.s32.totalorder %s403, %s406
      %p415 = scmp.eq.s32.totalorder %s34, 1
      %p416 = por %p414, %p415
      %p417 = scmp.ne.s32.totalorder %s406, %s407
      %p418 = scmp.eq.s32.totalorder %s34, 0
      %p419 = por %p417, %p418
      %p420 = scmp.ne.s32.totalorder %s406, %s407
      %p421 = scmp.eq.s32.totalorder %s35, 1
      %p422 = por %p420, %p421
      %p424 = scmp.ne.s32.totalorder %s407, %s423
      %p425 = scmp.eq.s32.totalorder %s35, 0
      %p426 = por %p424, %p425
      %p427 = scmp.le.s32.totalorder 1, %s29
      %p428 = scmp.lt.s32.totalorder %s29, 3
      %p429 = pnand %p427, %p428
      %p430 = pneg %p429
      // Predicated region
      $region9: #{tpu_custom_call.1} parent=5 // pred_check
        _
      $region10: #{tpu_custom_call.1} parent=5 // pred_check_branch
        %432 = sbr.rel (%p429) target = $region12
      $region11: #{tpu_custom_call.1} parent=5 // pred_region
        %s433 = ssub.s32 %s29, 1
        // Predicated region
        $region13: #{tpu_custom_call.1} parent=11 // pred_check
          %p434 = pneg %p118
        $region14: #{tpu_custom_call.1} parent=11 // pred_check_branch
          %436 = sbr.rel (%p434) target = $region16
        $region15: #{tpu_custom_call.1} parent=11 // pred_region
          _
        $region16: #{tpu_custom_call.1} parent=11 // pred_fallthru
          _
        // Predicated region
        $region17: #{tpu_custom_call.1} parent=11 // pred_check
          %p437 = pneg %p139
        $region18: #{tpu_custom_call.1} parent=11 // pred_check_branch
          %439 = sbr.rel (%p437) target = $region20
        $region19: #{tpu_custom_call.1} parent=11 // pred_region
          _
        $region20: #{tpu_custom_call.1} parent=11 // pred_fallthru
          _
        // Predicated region
        $region21: #{tpu_custom_call.1} parent=11 // pred_check
          %p440 = pneg %p160
        $region22: #{tpu_custom_call.1} parent=11 // pred_check_branch
          %442 = sbr.rel (%p440) target = $region24
        $region23: #{tpu_custom_call.1} parent=11 // pred_region
          %s444 = ssub.s32 2048, 2048
          %445 = vsyncadd [#allocation3], %s444
          %s446 = sshll.u32 [#allocation2], 4
          %s447 = int_to_ptr.vmem [resolvable:$true] %s446
          %452 = dma.hbm_to_vmem [thread:$0]  %s4, 2048, %s447, [#allocation3], 128, 128, 8
        $region24: #{tpu_custom_call.1} parent=11 // pred_fallthru
          _
        // Predicated region
        $region25: #{tpu_custom_call.1} parent=11 // pred_check
          %p453 = pneg %p181
        $region26: #{tpu_custom_call.1} parent=11 // pred_check_branch
          %455 = sbr.rel (%p453) target = $region28
        $region27: #{tpu_custom_call.1} parent=11 // pred_region
          _
        $region28: #{tpu_custom_call.1} parent=11 // pred_fallthru
          _
        // Predicated region
        $region29: #{tpu_custom_call.1} parent=11 // pred_check
          %p456 = pneg %p202
        $region30: #{tpu_custom_call.1} parent=11 // pred_check_branch
          %458 = sbr.rel (%p456) target = $region32
        $region31: #{tpu_custom_call.1} parent=11 // pred_region
          _
        $region32: #{tpu_custom_call.1} parent=11 // pred_fallthru
          _
        // Predicated region
        $region33: #{tpu_custom_call.1} parent=11 // pred_check
          %p459 = pneg %p223
        $region34: #{tpu_custom_call.1} parent=11 // pred_check_branch
          %461 = sbr.rel (%p459) target = $region36
        $region35: #{tpu_custom_call.1} parent=11 // pred_region
          _
        $region36: #{tpu_custom_call.1} parent=11 // pred_fallthru
          _
        // Predicated region
        $region37: #{tpu_custom_call.1} parent=11 // pred_check
          %p462 = pneg %p244
        $region38: #{tpu_custom_call.1} parent=11 // pred_check_branch
          %464 = sbr.rel (%p462) target = $region40
        $region39: #{tpu_custom_call.1} parent=11 // pred_region
          %s466 = ssub.s32 4096, 4096
          %467 = vsyncadd [#allocation6], %s466
          %s468 = sshll.u32 [#allocation5], 4
          %s469 = int_to_ptr.vmem [resolvable:$true] %s468
          %474 = dma.hbm_to_vmem [thread:$0]  %s8, 4096, %s469, [#allocation6], 128, 128, 8
        $region40: #{tpu_custom_call.1} parent=11 // pred_fallthru
          _
        // Predicated region
        $region41: #{tpu_custom_call.1} parent=11 // pred_check
          %p475 = pneg %p265
        $region42: #{tpu_custom_call.1} parent=11 // pred_check_branch
          %477 = sbr.rel (%p475) target = $region44
        $region43: #{tpu_custom_call.1} parent=11 // pred_region
          %s479 = ssub.s32 2048, 2048
          %480 = vsyncadd [#allocation6], %s479
          %s481 = sshll.u32 [#allocation7], 4
          %s482 = int_to_ptr.vmem [resolvable:$true] %s481
          %487 = dma.hbm_to_vmem [thread:$0]  %s9, 2048, %s482, [#allocation6], 128, 128, 8
        $region44: #{tpu_custom_call.1} parent=11 // pred_fallthru
          _
        // Predicated region
        $region45: #{tpu_custom_call.1} parent=11 // pred_check
          %p488 = pneg %p286
        $region46: #{tpu_custom_call.1} parent=11 // pred_check_branch
          %490 = sbr.rel (%p488) target = $region48
        $region47: #{tpu_custom_call.1} parent=11 // pred_region
          _
        $region48: #{tpu_custom_call.1} parent=11 // pred_fallthru
          _
        // Predicated region
        $region49: #{tpu_custom_call.1} parent=11 // pred_check
          %p491 = pneg %p307
        $region50: #{tpu_custom_call.1} parent=11 // pred_check_branch
          %493 = sbr.rel (%p491) target = $region52
        $region51: #{tpu_custom_call.1} parent=11 // pred_region
          %s495 = ssub.s32 4096, 4096
          %496 = vsyncadd [#allocation9], %s495
          %s497 = sshll.u32 [#allocation8], 4
          %s498 = int_to_ptr.vmem [resolvable:$true] %s497
          %503 = dma.hbm_to_vmem [thread:$0]  %s11, 4096, %s498, [#allocation9], 256, 256, 16
        $region52: #{tpu_custom_call.1} parent=11 // pred_fallthru
          _
        // Predicated region
        $region53: #{tpu_custom_call.1} parent=11 // pred_check
          %p504 = pneg %p328
        $region54: #{tpu_custom_call.1} parent=11 // pred_check_branch
          %506 = sbr.rel (%p504) target = $region56
        $region55: #{tpu_custom_call.1} parent=11 // pred_region
          _
        $region56: #{tpu_custom_call.1} parent=11 // pred_fallthru
          _
        // Predicated region
        $region57: #{tpu_custom_call.1} parent=11 // pred_check
          %p507 = pneg %p349
        $region58: #{tpu_custom_call.1} parent=11 // pred_check_branch
          %509 = sbr.rel (%p507) target = $region60
        $region59: #{tpu_custom_call.1} parent=11 // pred_region
          %s511 = ssub.s32 4096, 4096
          %512 = vsyncadd [#allocation9], %s511
          %s513 = sshll.u32 [#allocation10], 4
          %s514 = int_to_ptr.vmem [resolvable:$true] %s513
          %519 = dma.hbm_to_vmem [thread:$0]  %s13, 4096, %s514, [#allocation9], 128, 128, 8
        $region60: #{tpu_custom_call.1} parent=11 // pred_fallthru
          _
        // Predicated region
        $region61: #{tpu_custom_call.1} parent=11 // pred_check
          %p520 = pneg %p370
        $region62: #{tpu_custom_call.1} parent=11 // pred_check_branch
          %522 = sbr.rel (%p520) target = $region64
        $region63: #{tpu_custom_call.1} parent=11 // pred_region
          %s524 = ssub.s32 2048, 2048
          %525 = vsyncadd [#allocation12], %s524
          %s526 = sshll.u32 [#allocation11], 4
          %s527 = int_to_ptr.vmem [resolvable:$true] %s526
          %532 = dma.hbm_to_vmem [thread:$0]  %s14, 2048, %s527, [#allocation12], 128, 128, 8
        $region64: #{tpu_custom_call.1} parent=11 // pred_fallthru
          _
        // Predicated region
        $region65: #{tpu_custom_call.1} parent=11 // pred_check
          %p533 = pneg %p391
        $region66: #{tpu_custom_call.1} parent=11 // pred_check_branch
          %535 = sbr.rel (%p533) target = $region68
        $region67: #{tpu_custom_call.1} parent=11 // pred_region
          _
        $region68: #{tpu_custom_call.1} parent=11 // pred_fallthru
          _
      $region12: #{tpu_custom_call.1} parent=5 // pred_fallthru
        _
      %p536 = scmp.lt.s32.totalorder %s29, 2
      // Predicated region
      $region69: #{tpu_custom_call.1} parent=5 // pred_check
        %p537 = pneg %p536
      $region70: #{tpu_custom_call.1} parent=5 // pred_check_branch
        %539 = sbr.rel (%p537) target = $region72
      $region71: #{tpu_custom_call.1} parent=5 // pred_region
        // Predicated region
        $region73: #{tpu_custom_call.1} parent=71 // pred_check
          %p540 = pneg %p63
        $region74: #{tpu_custom_call.1} parent=71 // pred_check_branch
          %542 = sbr.rel (%p540) target = $region76
        $region75: #{tpu_custom_call.1} parent=71 // pred_region
          %s543 = smul.u32 8, %s37
          %p544 = scmp.lt.s32.totalorder %s36, 1
          %s545 = scalar_select %p544, %s36, 1
          %p546 = scmp.lt.s32.totalorder %s543, 7
          %s547 = scalar_select %p546, %s543, 7
          %s548 = smul.addr %s545, 8
          %s549 = sadd.s32 %s547, %s548
          %s550 = smul.addr %s549, 8
          %s551 = scalar_lea.vmem %s0, %s550
          %s552 = smul.u32 8, %s37
        $region76: #{tpu_custom_call.1} parent=71 // pred_fallthru
          _
        // Predicated region
        $region77: #{tpu_custom_call.1} parent=71 // pred_check
          %p553 = pneg %p91
        $region78: #{tpu_custom_call.1} parent=71 // pred_check_branch
          %555 = sbr.rel (%p553) target = $region80
        $region79: #{tpu_custom_call.1} parent=71 // pred_region
          %s556 = smul.u32 8, %s37
          %p557 = scmp.lt.s32.totalorder %s36, 1
          %s558 = scalar_select %p557, %s36, 1
          %p559 = scmp.lt.s32.totalorder %s556, 7
          %s560 = scalar_select %p559, %s556, 7
          %s561 = smul.addr %s558, 8
          %s562 = sadd.s32 %s560, %s561
          %s563 = smul.addr %s562, 8
          %s564 = scalar_lea.vmem %s1, %s563
          %s565 = smul.u32 8, %s37
        $region80: #{tpu_custom_call.1} parent=71 // pred_fallthru
          _
      $region72: #{tpu_custom_call.1} parent=5 // pred_fallthru
        _
      %p566 = scmp.le.s32.totalorder 1, %s29
      %p567 = scmp.lt.s32.totalorder %s29, 3
      %p568 = pnand %p566, %p567
      %p569 = pneg %p568
      // Predicated region
      $region81: #{tpu_custom_call.1} parent=5 // pred_check
        _
      $region82: #{tpu_custom_call.1} parent=5 // pred_check_branch
        %571 = sbr.rel (%p568) target = $region84
      $region83: #{tpu_custom_call.1} parent=5 // pred_region
        %s572 = ssub.s32 %s29, 1
        // Predicated region
        $region85: #{tpu_custom_call.1} parent=83 // pred_check
          %p573 = pneg %p160
        $region86: #{tpu_custom_call.1} parent=83 // pred_check_branch
          %575 = sbr.rel (%p573) target = $region88
        $region87: #{tpu_custom_call.1} parent=83 // pred_region
          %576 = dma.done [#allocation3], 2048
        $region88: #{tpu_custom_call.1} parent=83 // pred_fallthru
          _
        // Predicated region
        $region89: #{tpu_custom_call.1} parent=83 // pred_check
          %p577 = pneg %p244
        $region90: #{tpu_custom_call.1} parent=83 // pred_check_branch
          %579 = sbr.rel (%p577) target = $region92
        $region91: #{tpu_custom_call.1} parent=83 // pred_region
          %580 = dma.done [#allocation6], 4096
        $region92: #{tpu_custom_call.1} parent=83 // pred_fallthru
          _
        // Predicated region
        $region93: #{tpu_custom_call.1} parent=83 // pred_check
          %p581 = pneg %p265
        $region94: #{tpu_custom_call.1} parent=83 // pred_check_branch
          %583 = sbr.rel (%p581) target = $region96
        $region95: #{tpu_custom_call.1} parent=83 // pred_region
          %584 = dma.done [#allocation6], 2048
        $region96: #{tpu_custom_call.1} parent=83 // pred_fallthru
          _
        // Predicated region
        $region97: #{tpu_custom_call.1} parent=83 // pred_check
          %p585 = pneg %p307
        $region98: #{tpu_custom_call.1} parent=83 // pred_check_branch
          %587 = sbr.rel (%p585) target = $region100
        $region99: #{tpu_custom_call.1} parent=83 // pred_region
          %588 = dma.done [#allocation9], 4096
        $region100: #{tpu_custom_call.1} parent=83 // pred_fallthru
          _
        // Predicated region
        $region101: #{tpu_custom_call.1} parent=83 // pred_check
          %p589 = pneg %p349
        $region102: #{tpu_custom_call.1} parent=83 // pred_check_branch
          %591 = sbr.rel (%p589) target = $region104
        $region103: #{tpu_custom_call.1} parent=83 // pred_region
          %592 = dma.done [#allocation9], 4096
        $region104: #{tpu_custom_call.1} parent=83 // pred_fallthru
          _
        // Predicated region
        $region105: #{tpu_custom_call.1} parent=83 // pred_check
          %p593 = pneg %p370
        $region106: #{tpu_custom_call.1} parent=83 // pred_check_branch
          %595 = sbr.rel (%p593) target = $region108
        $region107: #{tpu_custom_call.1} parent=83 // pred_region
          %596 = dma.done [#allocation12], 2048
        $region108: #{tpu_custom_call.1} parent=83 // pred_fallthru
          _
        %s597 = smul.u32 8, %s39
        %p598 = scmp.lt.s32.totalorder %s38, 1
        %s599 = scalar_select %p598, %s38, 1
        %p600 = scmp.lt.s32.totalorder %s597, 7
        %s601 = scalar_select %p600, %s597, 7
        %s602 = smul.addr %s599, 8
        %s603 = sadd.s32 %s601, %s602
        %s604 = smul.addr %s603, 8
        %s605 = scalar_lea.vmem %s0, %s604
        %p606 = pneg %p69
        %p607 = pneg %p66
        %s608 = smul.u32 8, %s39
        %p609 = scmp.lt.s32.totalorder %s38, 1
        %s610 = scalar_select %p609, %s38, 1
        %p611 = scmp.lt.s32.totalorder %s608, 7
        %s612 = scalar_select %p611, %s608, 7
        %s613 = smul.addr %s610, 8
        %s614 = sadd.s32 %s612, %s613
        %s615 = smul.addr %s614, 8
        %s616 = scalar_lea.vmem %s1, %s615
        %p617 = pneg %p97
        %p618 = pneg %p94
        %p619 = pneg %p118
        %p620 = pneg %p115
        %p621 = pneg %p139
        %p622 = pneg %p136
        %p623 = pneg %p160
        %p624 = pneg %p157
        %p625 = pneg %p181
        %p626 = pneg %p178
        %p627 = pneg %p202
        %p628 = pneg %p199
        %p629 = pneg %p223
        %p630 = pneg %p220
        %p631 = pneg %p244
        %p632 = pneg %p241
        %p633 = pneg %p265
        %p634 = pneg %p262
        %p635 = pneg %p286
        %p636 = pneg %p283
        %p637 = pneg %p307
        %p638 = pneg %p304
        %p639 = pneg %p328
        %p640 = pneg %p325
        %p641 = pneg %p349
        %p642 = pneg %p346
        %p643 = pneg %p370
        %p644 = pneg %p367
        %p645 = pneg %p391
        %p646 = pneg %p388
        %p647 = pneg %p419
        %p648 = pneg %p416
        %s649 = sand.u32 %s406, 1
        %s650 = scalar_lea.sflag [#allocation4], %s649
        %s651 = sand.u32 %s406, 1
        %s652 = smul.addr %s651, 64
        %s653 = scalar_lea.vmem [#allocation13], %s652
        %s654 = smul.u32 8, %s39
        %p655 = scmp.lt.s32.totalorder %s38, 1
        %s656 = scalar_select %p655, %s38, 1
        %p657 = scmp.lt.s32.totalorder %s654, 7
        %s658 = scalar_select %p657, %s654, 7
        %s659 = smul.addr %s656, 8
        %s660 = sadd.s32 %s658, %s659
        %s661 = smul.addr %s660, 8
        %s662 = scalar_lea.vmem %s0, %s661
        %s663 = smul.u32 8, %s39
        %s664 = smul.u32 8, %s39
        %p665 = scmp.lt.s32.totalorder %s38, 1
        %s666 = scalar_select %p665, %s38, 1
        %p667 = scmp.lt.s32.totalorder %s664, 7
        %s668 = scalar_select %p667, %s664, 7
        %s669 = smul.addr %s666, 8
        %s670 = sadd.s32 %s668, %s669
        %s671 = smul.addr %s670, 8
        %s672 = scalar_lea.vmem %s1, %s671
        %s673 = smul.u32 8, %s39
        %s674 = smul.u32 8, %s39
        %v675 = vld [vmem:[%s662] sm:$0xff]
        %v676 = vld [vmem:[%s662 + $0x8] sm:$0xff]
        %v677 = vld [vmem:[%s662 + $0x10] sm:$0xff]
        %v678 = vld [vmem:[%s662 + $0x18] sm:$0xff]
        %v679 = vld [vmem:[%s662 + $0x20] sm:$0xff]
        %v680 = vld [vmem:[%s662 + $0x28] sm:$0xff]
        %v681 = vld [vmem:[%s662 + $0x30] sm:$0xff]
        %v682 = vld [vmem:[%s662 + $0x38] sm:$0xff]
        %v683 = vld [vmem:[%s2] sm:$0x1]
        %685 = vset.pattern.permute.xlu0 0
        %686 = vperm.xlu0 %685, %v675
        %v687 = vpop.permute.xlu0 %686
        %690 = vset.pattern.permute.xlu0 0
        %691 = vperm.xlu0 %690, %v676
        %v692 = vpop.permute.xlu0 %691
        %695 = vset.pattern.permute.xlu0 0
        %696 = vperm.xlu0 %695, %v677
        %v697 = vpop.permute.xlu0 %696
        %700 = vset.pattern.permute.xlu0 0
        %701 = vperm.xlu0 %700, %v678
        %v702 = vpop.permute.xlu0 %701
        %705 = vset.pattern.permute.xlu0 0
        %706 = vperm.xlu0 %705, %v679
        %v707 = vpop.permute.xlu0 %706
        %710 = vset.pattern.permute.xlu0 0
        %711 = vperm.xlu0 %710, %v680
        %v712 = vpop.permute.xlu0 %711
        %715 = vset.pattern.permute.xlu0 0
        %716 = vperm.xlu0 %715, %v681
        %v717 = vpop.permute.xlu0 %716
        %720 = vset.pattern.permute.xlu0 0
        %721 = vperm.xlu0 %720, %v682
        %v722 = vpop.permute.xlu0 %721
        %v724 = vlaneseq
        %v725 = vshrl.u32 %v724, 7
        %v726 = vsub.s32 0, %v725
        %v727 = vrot.slane %v683, %v726
        %v728 = vmul.f32 %v687, %v727
        %v729 = vmul.f32 %v692, %v727
        %v730 = vmul.f32 %v697, %v727
        %v731 = vmul.f32 %v702, %v727
        %v732 = vmul.f32 %v707, %v727
        %v733 = vmul.f32 %v712, %v727
        %v734 = vmul.f32 %v717, %v727
        %v735 = vmul.f32 %v722, %v727
        %v736 = vld [vmem:[%s2 + $0x1] sm:$0x1]
        %737 = vset.pattern.permute.xlu0 1
        %738 = vperm.xlu0 %737, %v675
        %v739 = vpop.permute.xlu0 %738
        %741 = vset.pattern.permute.xlu0 1
        %742 = vperm.xlu0 %741, %v676
        %v743 = vpop.permute.xlu0 %742
        %745 = vset.pattern.permute.xlu0 1
        %746 = vperm.xlu0 %745, %v677
        %v747 = vpop.permute.xlu0 %746
        %749 = vset.pattern.permute.xlu0 1
        %750 = vperm.xlu0 %749, %v678
        %v751 = vpop.permute.xlu0 %750
        %753 = vset.pattern.permute.xlu0 1
        %754 = vperm.xlu0 %753, %v679
        %v755 = vpop.permute.xlu0 %754
        %757 = vset.pattern.permute.xlu0 1
        %758 = vperm.xlu0 %757, %v680
        %v759 = vpop.permute.xlu0 %758
        %761 = vset.pattern.permute.xlu0 1
        %762 = vperm.xlu0 %761, %v681
        %v763 = vpop.permute.xlu0 %762
        %765 = vset.pattern.permute.xlu0 1
        %766 = vperm.xlu0 %765, %v682
        %v767 = vpop.permute.xlu0 %766
        %v769 = vlaneseq
        %v770 = vshrl.u32 %v769, 7
        %v771 = vsub.s32 0, %v770
        %v772 = vrot.slane %v736, %v771
        %v773 = vmul.f32 %v739, %v772
        %v774 = vmul.f32 %v743, %v772
        %v775 = vmul.f32 %v747, %v772
        %v776 = vmul.f32 %v751, %v772
        %v777 = vmul.f32 %v755, %v772
        %v778 = vmul.f32 %v759, %v772
        %v779 = vmul.f32 %v763, %v772
        %v780 = vmul.f32 %v767, %v772
        %v781 = vadd.f32 %v728, %v773
        %v782 = vadd.f32 %v729, %v774
        %v783 = vadd.f32 %v730, %v775
        %v784 = vadd.f32 %v731, %v776
        %v785 = vadd.f32 %v732, %v777
        %v786 = vadd.f32 %v733, %v778
        %v787 = vadd.f32 %v734, %v779
        %v788 = vadd.f32 %v735, %v780
        %v789 = vld [vmem:[%s2 + $0x2] sm:$0x1]
        %790 = vset.pattern.permute.xlu0 2
        %791 = vperm.xlu0 %790, %v675
        %v792 = vpop.permute.xlu0 %791
        %794 = vset.pattern.permute.xlu0 2
        %795 = vperm.xlu0 %794, %v676
        %v796 = vpop.permute.xlu0 %795
        %798 = vset.pattern.permute.xlu0 2
        %799 = vperm.xlu0 %798, %v677
        %v800 = vpop.permute.xlu0 %799
        %802 = vset.pattern.permute.xlu0 2
        %803 = vperm.xlu0 %802, %v678
        %v804 = vpop.permute.xlu0 %803
        %806 = vset.pattern.permute.xlu0 2
        %807 = vperm.xlu0 %806, %v679
        %v808 = vpop.permute.xlu0 %807
        %810 = vset.pattern.permute.xlu0 2
        %811 = vperm.xlu0 %810, %v680
        %v812 = vpop.permute.xlu0 %811
        %814 = vset.pattern.permute.xlu0 2
        %815 = vperm.xlu0 %814, %v681
        %v816 = vpop.permute.xlu0 %815
        %818 = vset.pattern.permute.xlu0 2
        %819 = vperm.xlu0 %818, %v682
        %v820 = vpop.permute.xlu0 %819
        %v822 = vlaneseq
        %v823 = vshrl.u32 %v822, 7
        %v824 = vsub.s32 0, %v823
        %v825 = vrot.slane %v789, %v824
        %v826 = vmul.f32 %v792, %v825
        %v827 = vmul.f32 %v796, %v825
        %v828 = vmul.f32 %v800, %v825
        %v829 = vmul.f32 %v804, %v825
        %v830 = vmul.f32 %v808, %v825
        %v831 = vmul.f32 %v812, %v825
        %v832 = vmul.f32 %v816, %v825
        %v833 = vmul.f32 %v820, %v825
        %v834 = vadd.f32 %v781, %v826
        %v835 = vadd.f32 %v782, %v827
        %v836 = vadd.f32 %v783, %v828
        %v837 = vadd.f32 %v784, %v829
        %v838 = vadd.f32 %v785, %v830
        %v839 = vadd.f32 %v786, %v831
        %v840 = vadd.f32 %v787, %v832
        %v841 = vadd.f32 %v788, %v833
        %v842 = vld [vmem:[%s3] sm:$0x1]
        %v844 = vlaneseq
        %v845 = vshrl.u32 %v844, 7
        %v846 = vsub.s32 0, %v845
        %v847 = vrot.slane %v842, %v846
        %v849 = vadd.f32 %v834, %v847
        %v850 = vadd.f32 %v835, %v847
        %v851 = vadd.f32 %v836, %v847
        %v852 = vadd.f32 %v837, %v847
        %v853 = vadd.f32 %v838, %v847
        %v854 = vadd.f32 %v839, %v847
        %v855 = vadd.f32 %v840, %v847
        %v856 = vadd.f32 %v841, %v847
        %v857 = vmax.f32 %v849, 0.0
        %v858 = vmax.f32 %v850, 0.0
        %v859 = vmax.f32 %v851, 0.0
        %v860 = vmax.f32 %v852, 0.0
        %v861 = vmax.f32 %v853, 0.0
        %v862 = vmax.f32 %v854, 0.0
        %v863 = vmax.f32 %v855, 0.0
        %v864 = vmax.f32 %v856, 0.0
        %v865 = vld [vmem:[#allocation2] sm:$0xff]
        %v866 = vld [vmem:[#allocation2 + $0x8] sm:$0xff]
        %v867 = vld [vmem:[#allocation2 + $0x10] sm:$0xff]
        %v868 = vld [vmem:[#allocation2 + $0x18] sm:$0xff]
        %v869 = vld [vmem:[#allocation2 + $0x20] sm:$0xff]
        %v870 = vld [vmem:[#allocation2 + $0x28] sm:$0xff]
        %v871 = vld [vmem:[#allocation2 + $0x30] sm:$0xff]
        %v872 = vld [vmem:[#allocation2 + $0x38] sm:$0xff]
        %v873 = vld [vmem:[#allocation2 + $0x40] sm:$0xff]
        %v874 = vld [vmem:[#allocation2 + $0x48] sm:$0xff]
        %v875 = vld [vmem:[#allocation2 + $0x50] sm:$0xff]
        %v876 = vld [vmem:[#allocation2 + $0x58] sm:$0xff]
        %v877 = vld [vmem:[#allocation2 + $0x60] sm:$0xff]
        %v878 = vld [vmem:[#allocation2 + $0x68] sm:$0xff]
        %v879 = vld [vmem:[#allocation2 + $0x70] sm:$0xff]
        %v880 = vld [vmem:[#allocation2 + $0x78] sm:$0xff]
        %v881 = vld [vmem:[%s5] sm:$0x1]
        %v883 = vlaneseq
        %v884 = vshrl.u32 %v883, 7
        %v885 = vsub.s32 0, %v884
        %v886 = vrot.slane %v881, %v885
        %888 = vmatprep.subr.mxu0 0.0
        %889 = vmatpush1.msra.mxu0 %v865
        %890 = vmatprep.subr.mxu0 0.0
        %891 = vmatpush1.msra.mxu0 %v866
        %892 = vmatprep.subr.mxu0 0.0
        %893 = vmatpush1.msra.mxu0 %v867
        %894 = vmatprep.subr.mxu0 0.0
        %895 = vmatpush1.msra.mxu0 %v868
        %896 = vmatprep.subr.mxu0 0.0
        %897 = vmatpush1.msra.mxu0 %v869
        %898 = vmatprep.subr.mxu0 0.0
        %899 = vmatpush1.msra.mxu0 %v870
        %900 = vmatprep.subr.mxu0 0.0
        %901 = vmatpush1.msra.mxu0 %v871
        %902 = vmatprep.subr.mxu0 0.0
        %903 = vmatpush1.msra.mxu0 %v872
        %904 = vmatprep.subr.mxu0 0.0
        %905 = vmatpush1.msra.mxu0 %v873
        %906 = vmatprep.subr.mxu0 0.0
        %907 = vmatpush1.msra.mxu0 %v874
        %908 = vmatprep.subr.mxu0 0.0
        %909 = vmatpush1.msra.mxu0 %v875
        %910 = vmatprep.subr.mxu0 0.0
        %911 = vmatpush1.msra.mxu0 %v876
        %912 = vmatprep.subr.mxu0 0.0
        %913 = vmatpush1.msra.mxu0 %v877
        %914 = vmatprep.subr.mxu0 0.0
        %915 = vmatpush1.msra.mxu0 %v878
        %916 = vmatprep.subr.mxu0 0.0
        %917 = vmatpush1.msra.mxu0 %v879
        %918 = vmatprep.subr.mxu0 0.0
        %919 = vmatpush1.msra.mxu0 %v880
        %920 = vmatprep.subr.mxu0 0.0
        %921 = vmatpush1.msra.mxu0 0.0
        %922 = vmatprep.subr.mxu0 0.0
        %923 = vmatpush1.msra.mxu0 0.0
        %924 = vmatprep.subr.mxu0 0.0
        %925 = vmatpush1.msra.mxu0 0.0
        %926 = vmatprep.subr.mxu0 0.0
        %927 = vmatpush1.msra.mxu0 0.0
        %928 = vmatprep.subr.mxu0 0.0
        %929 = vmatpush1.msra.mxu0 0.0
        %930 = vmatprep.subr.mxu0 0.0
        %931 = vmatpush1.msra.mxu0 0.0
        %932 = vmatprep.subr.mxu0 0.0
        %933 = vmatpush1.msra.mxu0 0.0
        %934 = vmatprep.subr.mxu0 0.0
        %935 = vmatpush1.msra.mxu0 0.0
        %936 = vmatprep.subr.mxu0 0.0
        %937 = vmatpush1.msra.mxu0 0.0
        %938 = vmatprep.subr.mxu0 0.0
        %939 = vmatpush1.msra.mxu0 0.0
        %940 = vmatprep.subr.mxu0 0.0
        %941 = vmatpush1.msra.mxu0 0.0
        %942 = vmatprep.subr.mxu0 0.0
        %943 = vmatpush1.msra.mxu0 0.0
        %944 = vmatprep.subr.mxu0 0.0
        %945 = vmatpush1.msra.mxu0 0.0
        %946 = vmatprep.subr.mxu0 0.0
        %947 = vmatpush1.msra.mxu0 0.0
        %948 = vmatprep.subr.mxu0 0.0
        %949 = vmatpush1.msra.mxu0 0.0
        %950 = vmatprep.subr.mxu0 0.0
        %951 = vmatpush1.msra.mxu0 0.0
        %952 = vmatprep.mubr.f32.mxu0 0.0
        %953 = vmatmul.mubr.f32.gmra.mrb[0].mxu0 %v857
        %v954 = vpop.f32.mrb[0].mxu0
        %v955 = vadd.f32 %v886, %v954
        %v956 = vpop.f32.mrb[0].mxu0
        %957 = vmatprep.mubr.f32.mxu0 0.0
        %958 = vmatmul.mubr.f32.gmra.mrb[0].mxu0 %v858
        %v959 = vpop.f32.mrb[0].mxu0
        %v960 = vadd.f32 %v886, %v959
        %v961 = vpop.f32.mrb[0].mxu0
        %962 = vmatprep.mubr.f32.mxu0 0.0
        %963 = vmatmul.mubr.f32.gmra.mrb[0].mxu0 %v859
        %v964 = vpop.f32.mrb[0].mxu0
        %v965 = vadd.f32 %v886, %v964
        %v966 = vpop.f32.mrb[0].mxu0
        %967 = vmatprep.mubr.f32.mxu0 0.0
        %968 = vmatmul.mubr.f32.gmra.mrb[0].mxu0 %v860
        %v969 = vpop.f32.mrb[0].mxu0
        %v970 = vadd.f32 %v886, %v969
        %v971 = vpop.f32.mrb[0].mxu0
        %972 = vmatprep.mubr.f32.mxu0 0.0
        %973 = vmatmul.mubr.f32.gmra.mrb[0].mxu0 %v861
        %v974 = vpop.f32.mrb[0].mxu0
        %v975 = vadd.f32 %v886, %v974
        %v976 = vpop.f32.mrb[0].mxu0
        %977 = vmatprep.mubr.f32.mxu0 0.0
        %978 = vmatmul.mubr.f32.gmra.mrb[0].mxu0 %v862
        %v979 = vpop.f32.mrb[0].mxu0
        %v980 = vadd.f32 %v886, %v979
        %v981 = vpop.f32.mrb[0].mxu0
        %982 = vmatprep.mubr.f32.mxu0 0.0
        %983 = vmatmul.mubr.f32.gmra.mrb[0].mxu0 %v863
        %v984 = vpop.f32.mrb[0].mxu0
        %v985 = vadd.f32 %v886, %v984
        %v986 = vpop.f32.mrb[0].mxu0
        %987 = vmatprep.mubr.f32.mxu0 0.0
        %988 = vmatmul.mubr.f32.gmra.mrb[0].mxu0 %v864
        %v989 = vpop.f32.mrb[0].mxu0
        %v990 = vadd.f32 %v886, %v989
        %v991 = vpop.f32.mrb[0].mxu0
        %992 = vdwg.mxu0
        %v993 = vmax.f32 %v955, 0.0
        %v994 = vmax.f32 %v960, 0.0
        %v995 = vmax.f32 %v965, 0.0
        %v996 = vmax.f32 %v970, 0.0
        %v997 = vmax.f32 %v975, 0.0
        %v998 = vmax.f32 %v980, 0.0
        %v999 = vmax.f32 %v985, 0.0
        %v1000 = vmax.f32 %v990, 0.0
        %v1001 = vld [vmem:[%s672] sm:$0xff]
        %v1002 = vld [vmem:[%s672 + $0x8] sm:$0xff]
        %v1003 = vld [vmem:[%s672 + $0x10] sm:$0xff]
        %v1004 = vld [vmem:[%s672 + $0x18] sm:$0xff]
        %v1005 = vld [vmem:[%s672 + $0x20] sm:$0xff]
        %v1006 = vld [vmem:[%s672 + $0x28] sm:$0xff]
        %v1007 = vld [vmem:[%s672 + $0x30] sm:$0xff]
        %v1008 = vld [vmem:[%s672 + $0x38] sm:$0xff]
        %1010 = vset.pattern.permute.xlu0 0
        %1011 = vperm.xlu0 %1010, %v1001
        %v1012 = vpop.permute.xlu0 %1011
        %1015 = vset.pattern.permute.xlu0 0
        %1016 = vperm.xlu0 %1015, %v1002
        %v1017 = vpop.permute.xlu0 %1016
        %1020 = vset.pattern.permute.xlu0 0
        %1021 = vperm.xlu0 %1020, %v1003
        %v1022 = vpop.permute.xlu0 %1021
        %1025 = vset.pattern.permute.xlu0 0
        %1026 = vperm.xlu0 %1025, %v1004
        %v1027 = vpop.permute.xlu0 %1026
        %1030 = vset.pattern.permute.xlu0 0
        %1031 = vperm.xlu0 %1030, %v1005
        %v1032 = vpop.permute.xlu0 %1031
        %1035 = vset.pattern.permute.xlu0 0
        %1036 = vperm.xlu0 %1035, %v1006
        %v1037 = vpop.permute.xlu0 %1036
        %1040 = vset.pattern.permute.xlu0 0
        %1041 = vperm.xlu0 %1040, %v1007
        %v1042 = vpop.permute.xlu0 %1041
        %1045 = vset.pattern.permute.xlu0 0
        %1046 = vperm.xlu0 %1045, %v1008
        %v1047 = vpop.permute.xlu0 %1046
        %v1049 = vmul.f32 %v1012, %v727
        %v1050 = vmul.f32 %v1017, %v727
        %v1051 = vmul.f32 %v1022, %v727
        %v1052 = vmul.f32 %v1027, %v727
        %v1053 = vmul.f32 %v1032, %v727
        %v1054 = vmul.f32 %v1037, %v727
        %v1055 = vmul.f32 %v1042, %v727
        %v1056 = vmul.f32 %v1047, %v727
        %1057 = vset.pattern.permute.xlu0 1
        %1058 = vperm.xlu0 %1057, %v1001
        %v1059 = vpop.permute.xlu0 %1058
        %1061 = vset.pattern.permute.xlu0 1
        %1062 = vperm.xlu0 %1061, %v1002
        %v1063 = vpop.permute.xlu0 %1062
        %1065 = vset.pattern.permute.xlu0 1
        %1066 = vperm.xlu0 %1065, %v1003
        %v1067 = vpop.permute.xlu0 %1066
        %1069 = vset.pattern.permute.xlu0 1
        %1070 = vperm.xlu0 %1069, %v1004
        %v1071 = vpop.permute.xlu0 %1070
        %1073 = vset.pattern.permute.xlu0 1
        %1074 = vperm.xlu0 %1073, %v1005
        %v1075 = vpop.permute.xlu0 %1074
        %1077 = vset.pattern.permute.xlu0 1
        %1078 = vperm.xlu0 %1077, %v1006
        %v1079 = vpop.permute.xlu0 %1078
        %1081 = vset.pattern.permute.xlu0 1
        %1082 = vperm.xlu0 %1081, %v1007
        %v1083 = vpop.permute.xlu0 %1082
        %1085 = vset.pattern.permute.xlu0 1
        %1086 = vperm.xlu0 %1085, %v1008
        %v1087 = vpop.permute.xlu0 %1086
        %v1089 = vmul.f32 %v1059, %v772
        %v1090 = vmul.f32 %v1063, %v772
        %v1091 = vmul.f32 %v1067, %v772
        %v1092 = vmul.f32 %v1071, %v772
        %v1093 = vmul.f32 %v1075, %v772
        %v1094 = vmul.f32 %v1079, %v772
        %v1095 = vmul.f32 %v1083, %v772
        %v1096 = vmul.f32 %v1087, %v772
        %v1097 = vadd.f32 %v1049, %v1089
        %v1098 = vadd.f32 %v1050, %v1090
        %v1099 = vadd.f32 %v1051, %v1091
        %v1100 = vadd.f32 %v1052, %v1092
        %v1101 = vadd.f32 %v1053, %v1093
        %v1102 = vadd.f32 %v1054, %v1094
        %v1103 = vadd.f32 %v1055, %v1095
        %v1104 = vadd.f32 %v1056, %v1096
        %1105 = vset.pattern.permute.xlu0 2
        %1106 = vperm.xlu0 %1105, %v1001
        %v1107 = vpop.permute.xlu0 %1106
        %1109 = vset.pattern.permute.xlu0 2
        %1110 = vperm.xlu0 %1109, %v1002
        %v1111 = vpop.permute.xlu0 %1110
        %1113 = vset.pattern.permute.xlu0 2
        %1114 = vperm.xlu0 %1113, %v1003
        %v1115 = vpop.permute.xlu0 %1114
        %1117 = vset.pattern.permute.xlu0 2
        %1118 = vperm.xlu0 %1117, %v1004
        %v1119 = vpop.permute.xlu0 %1118
        %1121 = vset.pattern.permute.xlu0 2
        %1122 = vperm.xlu0 %1121, %v1005
        %v1123 = vpop.permute.xlu0 %1122
        %1125 = vset.pattern.permute.xlu0 2
        %1126 = vperm.xlu0 %1125, %v1006
        %v1127 = vpop.permute.xlu0 %1126
        %1129 = vset.pattern.permute.xlu0 2
        %1130 = vperm.xlu0 %1129, %v1007
        %v1131 = vpop.permute.xlu0 %1130
        %1133 = vset.pattern.permute.xlu0 2
        %1134 = vperm.xlu0 %1133, %v1008
        %v1135 = vpop.permute.xlu0 %1134
        %v1137 = vmul.f32 %v1107, %v825
        %v1138 = vmul.f32 %v1111, %v825
        %v1139 = vmul.f32 %v1115, %v825
        %v1140 = vmul.f32 %v1119, %v825
        %v1141 = vmul.f32 %v1123, %v825
        %v1142 = vmul.f32 %v1127, %v825
        %v1143 = vmul.f32 %v1131, %v825
        %v1144 = vmul.f32 %v1135, %v825
        %v1145 = vadd.f32 %v1097, %v1137
        %v1146 = vadd.f32 %v1098, %v1138
        %v1147 = vadd.f32 %v1099, %v1139
        %v1148 = vadd.f32 %v1100, %v1140
        %v1149 = vadd.f32 %v1101, %v1141
        %v1150 = vadd.f32 %v1102, %v1142
        %v1151 = vadd.f32 %v1103, %v1143
        %v1152 = vadd.f32 %v1104, %v1144
        %v1153 = vadd.f32 %v1145, %v847
        %v1154 = vadd.f32 %v1146, %v847
        %v1155 = vadd.f32 %v1147, %v847
        %v1156 = vadd.f32 %v1148, %v847
        %v1157 = vadd.f32 %v1149, %v847
        %v1158 = vadd.f32 %v1150, %v847
        %v1159 = vadd.f32 %v1151, %v847
        %v1160 = vadd.f32 %v1152, %v847
        %v1161 = vmax.f32 %v1153, 0.0
        %v1162 = vmax.f32 %v1154, 0.0
        %v1163 = vmax.f32 %v1155, 0.0
        %v1164 = vmax.f32 %v1156, 0.0
        %v1165 = vmax.f32 %v1157, 0.0
        %v1166 = vmax.f32 %v1158, 0.0
        %v1167 = vmax.f32 %v1159, 0.0
        %v1168 = vmax.f32 %v1160, 0.0
        %1169 = vmatprep.subr.mxu0 0.0
        %1170 = vmatpush1.msra.mxu0 %v865
        %1171 = vmatprep.subr.mxu0 0.0
        %1172 = vmatpush1.msra.mxu0 %v866
        %1173 = vmatprep.subr.mxu0 0.0
        %1174 = vmatpush1.msra.mxu0 %v867
        %1175 = vmatprep.subr.mxu0 0.0
        %1176 = vmatpush1.msra.mxu0 %v868
        %1177 = vmatprep.subr.mxu0 0.0
        %1178 = vmatpush1.msra.mxu0 %v869
        %1179 = vmatprep.subr.mxu0 0.0
        %1180 = vmatpush1.msra.mxu0 %v870
        %1181 = vmatprep.subr.mxu0 0.0
        %1182 = vmatpush1.msra.mxu0 %v871
        %1183 = vmatprep.subr.mxu0 0.0
        %1184 = vmatpush1.msra.mxu0 %v872
        %1185 = vmatprep.subr.mxu0 0.0
        %1186 = vmatpush1.msra.mxu0 %v873
        %1187 = vmatprep.subr.mxu0 0.0
        %1188 = vmatpush1.msra.mxu0 %v874
        %1189 = vmatprep.subr.mxu0 0.0
        %1190 = vmatpush1.msra.mxu0 %v875
        %1191 = vmatprep.subr.mxu0 0.0
        %1192 = vmatpush1.msra.mxu0 %v876
        %1193 = vmatprep.subr.mxu0 0.0
        %1194 = vmatpush1.msra.mxu0 %v877
        %1195 = vmatprep.subr.mxu0 0.0
        %1196 = vmatpush1.msra.mxu0 %v878
        %1197 = vmatprep.subr.mxu0 0.0
        %1198 = vmatpush1.msra.mxu0 %v879
        %1199 = vmatprep.subr.mxu0 0.0
        %1200 = vmatpush1.msra.mxu0 %v880
        %1201 = vmatprep.subr.mxu0 0.0
        %1202 = vmatpush1.msra.mxu0 0.0
        %1203 = vmatprep.subr.mxu0 0.0
        %1204 = vmatpush1.msra.mxu0 0.0
        %1205 = vmatprep.subr.mxu0 0.0
        %1206 = vmatpush1.msra.mxu0 0.0
        %1207 = vmatprep.subr.mxu0 0.0
        %1208 = vmatpush1.msra.mxu0 0.0
        %1209 = vmatprep.subr.mxu0 0.0
        %1210 = vmatpush1.msra.mxu0 0.0
        %1211 = vmatprep.subr.mxu0 0.0
        %1212 = vmatpush1.msra.mxu0 0.0
        %1213 = vmatprep.subr.mxu0 0.0
        %1214 = vmatpush1.msra.mxu0 0.0
        %1215 = vmatprep.subr.mxu0 0.0
        %1216 = vmatpush1.msra.mxu0 0.0
        %1217 = vmatprep.subr.mxu0 0.0
        %1218 = vmatpush1.msra.mxu0 0.0
        %1219 = vmatprep.subr.mxu0 0.0
        %1220 = vmatpush1.msra.mxu0 0.0
        %1221 = vmatprep.subr.mxu0 0.0
        %1222 = vmatpush1.msra.mxu0 0.0
        %1223 = vmatprep.subr.mxu0 0.0
        %1224 = vmatpush1.msra.mxu0 0.0
        %1225 = vmatprep.subr.mxu0 0.0
        %1226 = vmatpush1.msra.mxu0 0.0
        %1227 = vmatprep.subr.mxu0 0.0
        %1228 = vmatpush1.msra.mxu0 0.0
        %1229 = vmatprep.subr.mxu0 0.0
        %1230 = vmatpush1.msra.mxu0 0.0
        %1231 = vmatprep.subr.mxu0 0.0
        %1232 = vmatpush1.msra.mxu0 0.0
        %1233 = vmatprep.mubr.f32.mxu0 0.0
        %1234 = vmatmul.mubr.f32.gmra.mrb[0].mxu0 %v1161
        %v1235 = vpop.f32.mrb[0].mxu0
        %v1236 = vadd.f32 %v886, %v1235
        %v1237 = vpop.f32.mrb[0].mxu0
        %1238 = vmatprep.mubr.f32.mxu0 0.0
        %1239 = vmatmul.mubr.f32.gmra.mrb[0].mxu0 %v1162
        %v1240 = vpop.f32.mrb[0].mxu0
        %v1241 = vadd.f32 %v886, %v1240
        %v1242 = vpop.f32.mrb[0].mxu0
        %1243 = vmatprep.mubr.f32.mxu0 0.0
        %1244 = vmatmul.mubr.f32.gmra.mrb[0].mxu0 %v1163
        %v1245 = vpop.f32.mrb[0].mxu0
        %v1246 = vadd.f32 %v886, %v1245
        %v1247 = vpop.f32.mrb[0].mxu0
        %1248 = vmatprep.mubr.f32.mxu0 0.0
        %1249 = vmatmul.mubr.f32.gmra.mrb[0].mxu0 %v1164
        %v1250 = vpop.f32.mrb[0].mxu0
        %v1251 = vadd.f32 %v886, %v1250
        %v1252 = vpop.f32.mrb[0].mxu0
        %1253 = vmatprep.mubr.f32.mxu0 0.0
        %1254 = vmatmul.mubr.f32.gmra.mrb[0].mxu0 %v1165
        %v1255 = vpop.f32.mrb[0].mxu0
        %v1256 = vadd.f32 %v886, %v1255
        %v1257 = vpop.f32.mrb[0].mxu0
        %1258 = vmatprep.mubr.f32.mxu0 0.0
        %1259 = vmatmul.mubr.f32.gmra.mrb[0].mxu0 %v1166
        %v1260 = vpop.f32.mrb[0].mxu0
        %v1261 = vadd.f32 %v886, %v1260
        %v1262 = vpop.f32.mrb[0].mxu0
        %1263 = vmatprep.mubr.f32.mxu0 0.0
        %1264 = vmatmul.mubr.f32.gmra.mrb[0].mxu0 %v1167
        %v1265 = vpop.f32.mrb[0].mxu0
        %v1266 = vadd.f32 %v886, %v1265
        %v1267 = vpop.f32.mrb[0].mxu0
        %1268 = vmatprep.mubr.f32.mxu0 0.0
        %1269 = vmatmul.mubr.f32.gmra.mrb[0].mxu0 %v1168
        %v1270 = vpop.f32.mrb[0].mxu0
        %v1271 = vadd.f32 %v886, %v1270
        %v1272 = vpop.f32.mrb[0].mxu0
        %1273 = vdwg.mxu0
        %v1274 = vmax.f32 %v1236, 0.0
        %v1275 = vmax.f32 %v1241, 0.0
        %v1276 = vmax.f32 %v1246, 0.0
        %v1277 = vmax.f32 %v1251, 0.0
        %v1278 = vmax.f32 %v1256, 0.0
        %v1279 = vmax.f32 %v1261, 0.0
        %v1280 = vmax.f32 %v1266, 0.0
        %v1281 = vmax.f32 %v1271, 0.0
        %v1282 = vld [vmem:[%s6] sm:$0xff]
        %v1283 = vld [vmem:[%s6 + $0x8] sm:$0xff]
        %v1284 = vld [vmem:[%s6 + $0x10] sm:$0xff]
        %v1285 = vld [vmem:[%s6 + $0x18] sm:$0xff]
        %v1286 = vld [vmem:[%s6 + $0x20] sm:$0xff]
        %v1287 = vld [vmem:[%s6 + $0x28] sm:$0xff]
        %v1288 = vld [vmem:[%s6 + $0x30] sm:$0xff]
        %v1289 = vld [vmem:[%s6 + $0x38] sm:$0xff]
        %v1290 = vld [vmem:[%s6 + $0x40] sm:$0xff]
        %v1291 = vld [vmem:[%s6 + $0x48] sm:$0xff]
        %v1292 = vld [vmem:[%s6 + $0x50] sm:$0xff]
        %v1293 = vld [vmem:[%s6 + $0x58] sm:$0xff]
        %v1294 = vld [vmem:[%s6 + $0x60] sm:$0xff]
        %v1295 = vld [vmem:[%s6 + $0x68] sm:$0xff]
        %v1296 = vld [vmem:[%s6 + $0x70] sm:$0xff]
        %v1297 = vld [vmem:[%s6 + $0x78] sm:$0xff]
        %v1298 = vld [vmem:[%s6 + $0x80] sm:$0xff]
        %v1299 = vld [vmem:[%s6 + $0x88] sm:$0xff]
        %v1300 = vld [vmem:[%s6 + $0x90] sm:$0xff]
        %v1301 = vld [vmem:[%s6 + $0x98] sm:$0xff]
        %v1302 = vld [vmem:[%s6 + $0xa0] sm:$0xff]
        %v1303 = vld [vmem:[%s6 + $0xa8] sm:$0xff]
        %v1304 = vld [vmem:[%s6 + $0xb0] sm:$0xff]
        %v1305 = vld [vmem:[%s6 + $0xb8] sm:$0xff]
        %v1306 = vld [vmem:[%s6 + $0xc0] sm:$0xff]
        %v1307 = vld [vmem:[%s6 + $0xc8] sm:$0xff]
        %v1308 = vld [vmem:[%s6 + $0xd0] sm:$0xff]
        %v1309 = vld [vmem:[%s6 + $0xd8] sm:$0xff]
        %v1310 = vld [vmem:[%s6 + $0xe0] sm:$0xff]
        %v1311 = vld [vmem:[%s6 + $0xe8] sm:$0xff]
        %v1312 = vld [vmem:[%s6 + $0xf0] sm:$0xff]
        %v1313 = vld [vmem:[%s6 + $0xf8] sm:$0xff]
        %v1314 = vld [vmem:[%s7] sm:$0x3]
        %v1316 = vlaneseq
        %v1317 = vshrl.u32 %v1316, 7
        %v1318 = vsub.s32 0, %v1317
        %v1319 = vrot.slane %v1314, %v1318
        %v1320 = vlaneseq
        %v1321 = vshrl.u32 %v1320, 7
        %v1322 = vsub.s32 1, %v1321
        %v1323 = vrot.slane %v1314, %v1322
        %1326 = vmatprep.subr.mxu0 %v1283
        %1327 = vmatpush1.msra.mxu0 %v1282
        %1328 = vmatprep.subr.mxu0 %v1285
        %1329 = vmatpush1.msra.mxu0 %v1284
        %1330 = vmatprep.subr.mxu0 %v1287
        %1331 = vmatpush1.msra.mxu0 %v1286
        %1332 = vmatprep.subr.mxu0 %v1289
        %1333 = vmatpush1.msra.mxu0 %v1288
        %1334 = vmatprep.subr.mxu0 %v1291
        %1335 = vmatpush1.msra.mxu0 %v1290
        %1336 = vmatprep.subr.mxu0 %v1293
        %1337 = vmatpush1.msra.mxu0 %v1292
        %1338 = vmatprep.subr.mxu0 %v1295
        %1339 = vmatpush1.msra.mxu0 %v1294
        %1340 = vmatprep.subr.mxu0 %v1297
        %1341 = vmatpush1.msra.mxu0 %v1296
        %1342 = vmatprep.subr.mxu0 %v1299
        %1343 = vmatpush1.msra.mxu0 %v1298
        %1344 = vmatprep.subr.mxu0 %v1301
        %1345 = vmatpush1.msra.mxu0 %v1300
        %1346 = vmatprep.subr.mxu0 %v1303
        %1347 = vmatpush1.msra.mxu0 %v1302
        %1348 = vmatprep.subr.mxu0 %v1305
        %1349 = vmatpush1.msra.mxu0 %v1304
        %1350 = vmatprep.subr.mxu0 %v1307
        %1351 = vmatpush1.msra.mxu0 %v1306
        %1352 = vmatprep.subr.mxu0 %v1309
        %1353 = vmatpush1.msra.mxu0 %v1308
        %1354 = vmatprep.subr.mxu0 %v1311
        %1355 = vmatpush1.msra.mxu0 %v1310
        %1356 = vmatprep.subr.mxu0 %v1313
        %1357 = vmatpush1.msra.mxu0 %v1312
        %1358 = vmatprep.subr.mxu0 0.0
        %1359 = vmatpush1.msra.mxu0 0.0
        %1360 = vmatprep.subr.mxu0 0.0
        %1361 = vmatpush1.msra.mxu0 0.0
        %1362 = vmatprep.subr.mxu0 0.0
        %1363 = vmatpush1.msra.mxu0 0.0
        %1364 = vmatprep.subr.mxu0 0.0
        %1365 = vmatpush1.msra.mxu0 0.0
        %1366 = vmatprep.subr.mxu0 0.0
        %1367 = vmatpush1.msra.mxu0 0.0
        %1368 = vmatprep.subr.mxu0 0.0
        %1369 = vmatpush1.msra.mxu0 0.0
        %1370 = vmatprep.subr.mxu0 0.0
        %1371 = vmatpush1.msra.mxu0 0.0
        %1372 = vmatprep.subr.mxu0 0.0
        %1373 = vmatpush1.msra.mxu0 0.0
        %1374 = vmatprep.subr.mxu0 0.0
        %1375 = vmatpush1.msra.mxu0 0.0
        %1376 = vmatprep.subr.mxu0 0.0
        %1377 = vmatpush1.msra.mxu0 0.0
        %1378 = vmatprep.subr.mxu0 0.0
        %1379 = vmatpush1.msra.mxu0 0.0
        %1380 = vmatprep.subr.mxu0 0.0
        %1381 = vmatpush1.msra.mxu0 0.0
        %1382 = vmatprep.subr.mxu0 0.0
        %1383 = vmatpush1.msra.mxu0 0.0
        %1384 = vmatprep.subr.mxu0 0.0
        %1385 = vmatpush1.msra.mxu0 0.0
        %1386 = vmatprep.subr.mxu0 0.0
        %1387 = vmatpush1.msra.mxu0 0.0
        %1388 = vmatprep.subr.mxu0 0.0
        %1389 = vmatpush1.msra.mxu0 0.0
        %1390 = vmatprep.mubr.f32.mxu0 0.0
        %1391 = vmatmul.mubr.f32.gmra.mrb[0].mxu0 %v993
        %v1392 = vpop.f32.mrb[0].mxu0
        %v1393 = vadd.f32 %v1319, %v1392
        %v1394 = vpop.f32.mrb[0].mxu0
        %v1395 = vadd.f32 %v1323, %v1394
        %1396 = vmatprep.mubr.f32.mxu0 0.0
        %1397 = vmatmul.mubr.f32.gmra.mrb[0].mxu0 %v994
        %v1398 = vpop.f32.mrb[0].mxu0
        %v1399 = vadd.f32 %v1319, %v1398
        %v1400 = vpop.f32.mrb[0].mxu0
        %v1401 = vadd.f32 %v1323, %v1400
        %1402 = vmatprep.mubr.f32.mxu0 0.0
        %1403 = vmatmul.mubr.f32.gmra.mrb[0].mxu0 %v995
        %v1404 = vpop.f32.mrb[0].mxu0
        %v1405 = vadd.f32 %v1319, %v1404
        %v1406 = vpop.f32.mrb[0].mxu0
        %v1407 = vadd.f32 %v1323, %v1406
        %1408 = vmatprep.mubr.f32.mxu0 0.0
        %1409 = vmatmul.mubr.f32.gmra.mrb[0].mxu0 %v996
        %v1410 = vpop.f32.mrb[0].mxu0
        %v1411 = vadd.f32 %v1319, %v1410
        %v1412 = vpop.f32.mrb[0].mxu0
        %v1413 = vadd.f32 %v1323, %v1412
        %1414 = vmatprep.mubr.f32.mxu0 0.0
        %1415 = vmatmul.mubr.f32.gmra.mrb[0].mxu0 %v997
        %v1416 = vpop.f32.mrb[0].mxu0
        %v1417 = vadd.f32 %v1319, %v1416
        %v1418 = vpop.f32.mrb[0].mxu0
        %v1419 = vadd.f32 %v1323, %v1418
        %1420 = vmatprep.mubr.f32.mxu0 0.0
        %1421 = vmatmul.mubr.f32.gmra.mrb[0].mxu0 %v998
        %v1422 = vpop.f32.mrb[0].mxu0
        %v1423 = vadd.f32 %v1319, %v1422
        %v1424 = vpop.f32.mrb[0].mxu0
        %v1425 = vadd.f32 %v1323, %v1424
        %1426 = vmatprep.mubr.f32.mxu0 0.0
        %1427 = vmatmul.mubr.f32.gmra.mrb[0].mxu0 %v999
        %v1428 = vpop.f32.mrb[0].mxu0
        %v1429 = vadd.f32 %v1319, %v1428
        %v1430 = vpop.f32.mrb[0].mxu0
        %v1431 = vadd.f32 %v1323, %v1430
        %1432 = vmatprep.mubr.f32.mxu0 0.0
        %1433 = vmatmul.mubr.f32.gmra.mrb[0].mxu0 %v1000
        %v1434 = vpop.f32.mrb[0].mxu0
        %v1435 = vadd.f32 %v1319, %v1434
        %v1436 = vpop.f32.mrb[0].mxu0
        %v1437 = vadd.f32 %v1323, %v1436
        %1438 = vdwg.mxu0
        %v1439 = vmax.f32 %v1393, 0.0
        %v1440 = vmax.f32 %v1395, 0.0
        %v1441 = vmax.f32 %v1399, 0.0
        %v1442 = vmax.f32 %v1401, 0.0
        %v1443 = vmax.f32 %v1405, 0.0
        %v1444 = vmax.f32 %v1407, 0.0
        %v1445 = vmax.f32 %v1411, 0.0
        %v1446 = vmax.f32 %v1413, 0.0
        %v1447 = vmax.f32 %v1417, 0.0
        %v1448 = vmax.f32 %v1419, 0.0
        %v1449 = vmax.f32 %v1423, 0.0
        %v1450 = vmax.f32 %v1425, 0.0
        %v1451 = vmax.f32 %v1429, 0.0
        %v1452 = vmax.f32 %v1431, 0.0
        %v1453 = vmax.f32 %v1435, 0.0
        %v1454 = vmax.f32 %v1437, 0.0
        %v1455 = vld [vmem:[#allocation5] sm:$0xff]
        %v1456 = vld [vmem:[#allocation5 + $0x8] sm:$0xff]
        %v1457 = vld [vmem:[#allocation5 + $0x10] sm:$0xff]
        %v1458 = vld [vmem:[#allocation5 + $0x18] sm:$0xff]
        %v1459 = vld [vmem:[#allocation5 + $0x20] sm:$0xff]
        %v1460 = vld [vmem:[#allocation5 + $0x28] sm:$0xff]
        %v1461 = vld [vmem:[#allocation5 + $0x30] sm:$0xff]
        %v1462 = vld [vmem:[#allocation5 + $0x38] sm:$0xff]
        %v1463 = vld [vmem:[#allocation5 + $0x40] sm:$0xff]
        %v1464 = vld [vmem:[#allocation5 + $0x48] sm:$0xff]
        %v1465 = vld [vmem:[#allocation5 + $0x50] sm:$0xff]
        %v1466 = vld [vmem:[#allocation5 + $0x58] sm:$0xff]
        %v1467 = vld [vmem:[#allocation5 + $0x60] sm:$0xff]
        %v1468 = vld [vmem:[#allocation5 + $0x68] sm:$0xff]
        %v1469 = vld [vmem:[#allocation5 + $0x70] sm:$0xff]
        %v1470 = vld [vmem:[#allocation5 + $0x78] sm:$0xff]
        %v1471 = vld [vmem:[#allocation5 + $0x80] sm:$0xff]
        %v1472 = vld [vmem:[#allocation5 + $0x88] sm:$0xff]
        %v1473 = vld [vmem:[#allocation5 + $0x90] sm:$0xff]
        %v1474 = vld [vmem:[#allocation5 + $0x98] sm:$0xff]
        %v1475 = vld [vmem:[#allocation5 + $0xa0] sm:$0xff]
        %v1476 = vld [vmem:[#allocation5 + $0xa8] sm:$0xff]
        %v1477 = vld [vmem:[#allocation5 + $0xb0] sm:$0xff]
        %v1478 = vld [vmem:[#allocation5 + $0xb8] sm:$0xff]
        %v1479 = vld [vmem:[#allocation5 + $0xc0] sm:$0xff]
        %v1480 = vld [vmem:[#allocation5 + $0xc8] sm:$0xff]
        %v1481 = vld [vmem:[#allocation5 + $0xd0] sm:$0xff]
        %v1482 = vld [vmem:[#allocation5 + $0xd8] sm:$0xff]
        %v1483 = vld [vmem:[#allocation5 + $0xe0] sm:$0xff]
        %v1484 = vld [vmem:[#allocation5 + $0xe8] sm:$0xff]
        %v1485 = vld [vmem:[#allocation5 + $0xf0] sm:$0xff]
        %v1486 = vld [vmem:[#allocation5 + $0xf8] sm:$0xff]
        %v1487 = vld [vmem:[#allocation7] sm:$0xff]
        %v1488 = vld [vmem:[#allocation7 + $0x8] sm:$0xff]
        %v1489 = vld [vmem:[#allocation7 + $0x10] sm:$0xff]
        %v1490 = vld [vmem:[#allocation7 + $0x18] sm:$0xff]
        %v1491 = vld [vmem:[#allocation7 + $0x20] sm:$0xff]
        %v1492 = vld [vmem:[#allocation7 + $0x28] sm:$0xff]
        %v1493 = vld [vmem:[#allocation7 + $0x30] sm:$0xff]
        %v1494 = vld [vmem:[#allocation7 + $0x38] sm:$0xff]
        %v1495 = vld [vmem:[#allocation7 + $0x40] sm:$0xff]
        %v1496 = vld [vmem:[#allocation7 + $0x48] sm:$0xff]
        %v1497 = vld [vmem:[#allocation7 + $0x50] sm:$0xff]
        %v1498 = vld [vmem:[#allocation7 + $0x58] sm:$0xff]
        %v1499 = vld [vmem:[#allocation7 + $0x60] sm:$0xff]
        %v1500 = vld [vmem:[#allocation7 + $0x68] sm:$0xff]
        %v1501 = vld [vmem:[#allocation7 + $0x70] sm:$0xff]
        %v1502 = vld [vmem:[#allocation7 + $0x78] sm:$0xff]
        %1503 = vmatprep.subr.mxu0 0.0
        %1504 = vmatpush1.msra.mxu0 %v1487
        %1505 = vmatprep.subr.mxu0 0.0
        %1506 = vmatpush1.msra.mxu0 %v1488
        %1507 = vmatprep.subr.mxu0 0.0
        %1508 = vmatpush1.msra.mxu0 %v1489
        %1509 = vmatprep.subr.mxu0 0.0
        %1510 = vmatpush1.msra.mxu0 %v1490
        %1511 = vmatprep.subr.mxu0 0.0
        %1512 = vmatpush1.msra.mxu0 %v1491
        %1513 = vmatprep.subr.mxu0 0.0
        %1514 = vmatpush1.msra.mxu0 %v1492
        %1515 = vmatprep.subr.mxu0 0.0
        %1516 = vmatpush1.msra.mxu0 %v1493
        %1517 = vmatprep.subr.mxu0 0.0
        %1518 = vmatpush1.msra.mxu0 %v1494
        %1519 = vmatprep.subr.mxu0 0.0
        %1520 = vmatpush1.msra.mxu0 %v1495
        %1521 = vmatprep.subr.mxu0 0.0
        %1522 = vmatpush1.msra.mxu0 %v1496
        %1523 = vmatprep.subr.mxu0 0.0
        %1524 = vmatpush1.msra.mxu0 %v1497
        %1525 = vmatprep.subr.mxu0 0.0
        %1526 = vmatpush1.msra.mxu0 %v1498
        %1527 = vmatprep.subr.mxu0 0.0
        %1528 = vmatpush1.msra.mxu0 %v1499
        %1529 = vmatprep.subr.mxu0 0.0
        %1530 = vmatpush1.msra.mxu0 %v1500
        %1531 = vmatprep.subr.mxu0 0.0
        %1532 = vmatpush1.msra.mxu0 %v1501
        %1533 = vmatprep.subr.mxu0 0.0
        %1534 = vmatpush1.msra.mxu0 %v1502
        %1535 = vmatprep.subr.mxu0 0.0
        %1536 = vmatpush1.msra.mxu0 0.0
        %1537 = vmatprep.subr.mxu0 0.0
        %1538 = vmatpush1.msra.mxu0 0.0
        %1539 = vmatprep.subr.mxu0 0.0
        %1540 = vmatpush1.msra.mxu0 0.0
        %1541 = vmatprep.subr.mxu0 0.0
        %1542 = vmatpush1.msra.mxu0 0.0
        %1543 = vmatprep.subr.mxu0 0.0
        %1544 = vmatpush1.msra.mxu0 0.0
        %1545 = vmatprep.subr.mxu0 0.0
        %1546 = vmatpush1.msra.mxu0 0.0
        %1547 = vmatprep.subr.mxu0 0.0
        %1548 = vmatpush1.msra.mxu0 0.0
        %1549 = vmatprep.subr.mxu0 0.0
        %1550 = vmatpush1.msra.mxu0 0.0
        %1551 = vmatprep.subr.mxu0 0.0
        %1552 = vmatpush1.msra.mxu0 0.0
        %1553 = vmatprep.subr.mxu0 0.0
        %1554 = vmatpush1.msra.mxu0 0.0
        %1555 = vmatprep.subr.mxu0 0.0
        %1556 = vmatpush1.msra.mxu0 0.0
        %1557 = vmatprep.subr.mxu0 0.0
        %1558 = vmatpush1.msra.mxu0 0.0
        %1559 = vmatprep.subr.mxu0 0.0
        %1560 = vmatpush1.msra.mxu0 0.0
        %1561 = vmatprep.subr.mxu0 0.0
        %1562 = vmatpush1.msra.mxu0 0.0
        %1563 = vmatprep.subr.mxu0 0.0
        %1564 = vmatpush1.msra.mxu0 0.0
        %1565 = vmatprep.subr.mxu0 0.0
        %1566 = vmatpush1.msra.mxu0 0.0
        %1567 = vmatprep.mubr.f32.mxu0 0.0
        %1568 = vmatmul.mubr.f32.gmra.mrb[0].mxu0 %v993
        %v1569 = vpop.f32.mrb[0].mxu0
        %v1570 = vadd.f32 0.0, %v1569
        %v1571 = vpop.f32.mrb[0].mxu0
        %1572 = vmatprep.mubr.f32.mxu0 0.0
        %1573 = vmatmul.mubr.f32.gmra.mrb[0].mxu0 %v994
        %v1574 = vpop.f32.mrb[0].mxu0
        %v1575 = vadd.f32 0.0, %v1574
        %v1576 = vpop.f32.mrb[0].mxu0
        %1577 = vmatprep.mubr.f32.mxu0 0.0
        %1578 = vmatmul.mubr.f32.gmra.mrb[0].mxu0 %v995
        %v1579 = vpop.f32.mrb[0].mxu0
        %v1580 = vadd.f32 0.0, %v1579
        %v1581 = vpop.f32.mrb[0].mxu0
        %1582 = vmatprep.mubr.f32.mxu0 0.0
        %1583 = vmatmul.mubr.f32.gmra.mrb[0].mxu0 %v996
        %v1584 = vpop.f32.mrb[0].mxu0
        %v1585 = vadd.f32 0.0, %v1584
        %v1586 = vpop.f32.mrb[0].mxu0
        %1587 = vmatprep.mubr.f32.mxu0 0.0
        %1588 = vmatmul.mubr.f32.gmra.mrb[0].mxu0 %v997
        %v1589 = vpop.f32.mrb[0].mxu0
        %v1590 = vadd.f32 0.0, %v1589
        %v1591 = vpop.f32.mrb[0].mxu0
        %1592 = vmatprep.mubr.f32.mxu0 0.0
        %1593 = vmatmul.mubr.f32.gmra.mrb[0].mxu0 %v998
        %v1594 = vpop.f32.mrb[0].mxu0
        %v1595 = vadd.f32 0.0, %v1594
        %v1596 = vpop.f32.mrb[0].mxu0
        %1597 = vmatprep.mubr.f32.mxu0 0.0
        %1598 = vmatmul.mubr.f32.gmra.mrb[0].mxu0 %v999
        %v1599 = vpop.f32.mrb[0].mxu0
        %v1600 = vadd.f32 0.0, %v1599
        %v1601 = vpop.f32.mrb[0].mxu0
        %1602 = vmatprep.mubr.f32.mxu0 0.0
        %1603 = vmatmul.mubr.f32.gmra.mrb[0].mxu0 %v1000
        %v1604 = vpop.f32.mrb[0].mxu0
        %v1605 = vadd.f32 0.0, %v1604
        %v1606 = vpop.f32.mrb[0].mxu0
        %1607 = vdwg.mxu0
        %1608 = vmatprep.subr.mxu0 0.0
        %1609 = vmatpush1.msra.mxu0 %v1455
        %1610 = vmatprep.subr.mxu0 0.0
        %1611 = vmatpush1.msra.mxu0 %v1456
        %1612 = vmatprep.subr.mxu0 0.0
        %1613 = vmatpush1.msra.mxu0 %v1457
        %1614 = vmatprep.subr.mxu0 0.0
        %1615 = vmatpush1.msra.mxu0 %v1458
        %1616 = vmatprep.subr.mxu0 0.0
        %1617 = vmatpush1.msra.mxu0 %v1459
        %1618 = vmatprep.subr.mxu0 0.0
        %1619 = vmatpush1.msra.mxu0 %v1460
        %1620 = vmatprep.subr.mxu0 0.0
        %1621 = vmatpush1.msra.mxu0 %v1461
        %1622 = vmatprep.subr.mxu0 0.0
        %1623 = vmatpush1.msra.mxu0 %v1462
        %1624 = vmatprep.subr.mxu0 0.0
        %1625 = vmatpush1.msra.mxu0 %v1463
        %1626 = vmatprep.subr.mxu0 0.0
        %1627 = vmatpush1.msra.mxu0 %v1464
        %1628 = vmatprep.subr.mxu0 0.0
        %1629 = vmatpush1.msra.mxu0 %v1465
        %1630 = vmatprep.subr.mxu0 0.0
        %1631 = vmatpush1.msra.mxu0 %v1466
        %1632 = vmatprep.subr.mxu0 0.0
        %1633 = vmatpush1.msra.mxu0 %v1467
        %1634 = vmatprep.subr.mxu0 0.0
        %1635 = vmatpush1.msra.mxu0 %v1468
        %1636 = vmatprep.subr.mxu0 0.0
        %1637 = vmatpush1.msra.mxu0 %v1469
        %1638 = vmatprep.subr.mxu0 0.0
        %1639 = vmatpush1.msra.mxu0 %v1470
        %1640 = vmatprep.subr.mxu0 0.0
        %1641 = vmatpush1.msra.mxu0 %v1471
        %1642 = vmatprep.subr.mxu0 0.0
        %1643 = vmatpush1.msra.mxu0 %v1472
        %1644 = vmatprep.subr.mxu0 0.0
        %1645 = vmatpush1.msra.mxu0 %v1473
        %1646 = vmatprep.subr.mxu0 0.0
        %1647 = vmatpush1.msra.mxu0 %v1474
        %1648 = vmatprep.subr.mxu0 0.0
        %1649 = vmatpush1.msra.mxu0 %v1475
        %1650 = vmatprep.subr.mxu0 0.0
        %1651 = vmatpush1.msra.mxu0 %v1476
        %1652 = vmatprep.subr.mxu0 0.0
        %1653 = vmatpush1.msra.mxu0 %v1477
        %1654 = vmatprep.subr.mxu0 0.0
        %1655 = vmatpush1.msra.mxu0 %v1478
        %1656 = vmatprep.subr.mxu0 0.0
        %1657 = vmatpush1.msra.mxu0 %v1479
        %1658 = vmatprep.subr.mxu0 0.0
        %1659 = vmatpush1.msra.mxu0 %v1480
        %1660 = vmatprep.subr.mxu0 0.0
        %1661 = vmatpush1.msra.mxu0 %v1481
        %1662 = vmatprep.subr.mxu0 0.0
        %1663 = vmatpush1.msra.mxu0 %v1482
        %1664 = vmatprep.subr.mxu0 0.0
        %1665 = vmatpush1.msra.mxu0 %v1483
        %1666 = vmatprep.subr.mxu0 0.0
        %1667 = vmatpush1.msra.mxu0 %v1484
        %1668 = vmatprep.subr.mxu0 0.0
        %1669 = vmatpush1.msra.mxu0 %v1485
        %1670 = vmatprep.subr.mxu0 0.0
        %1671 = vmatpush1.msra.mxu0 %v1486
        %1672 = vmatprep.mubr.f32.mxu0 %v1440
        %1673 = vmatmul.mubr.f32.gmra.mrb[0].mxu0 %v1439
        %v1674 = vpop.f32.mrb[0].mxu0
        %v1675 = vadd.f32 %v1570, %v1674
        %v1676 = vpop.f32.mrb[0].mxu0
        %1677 = vmatprep.mubr.f32.mxu0 %v1442
        %1678 = vmatmul.mubr.f32.gmra.mrb[0].mxu0 %v1441
        %v1679 = vpop.f32.mrb[0].mxu0
        %v1680 = vadd.f32 %v1575, %v1679
        %v1681 = vpop.f32.mrb[0].mxu0
        %1682 = vmatprep.mubr.f32.mxu0 %v1444
        %1683 = vmatmul.mubr.f32.gmra.mrb[0].mxu0 %v1443
        %v1684 = vpop.f32.mrb[0].mxu0
        %v1685 = vadd.f32 %v1580, %v1684
        %v1686 = vpop.f32.mrb[0].mxu0
        %1687 = vmatprep.mubr.f32.mxu0 %v1446
        %1688 = vmatmul.mubr.f32.gmra.mrb[0].mxu0 %v1445
        %v1689 = vpop.f32.mrb[0].mxu0
        %v1690 = vadd.f32 %v1585, %v1689
        %v1691 = vpop.f32.mrb[0].mxu0
        %1692 = vmatprep.mubr.f32.mxu0 %v1448
        %1693 = vmatmul.mubr.f32.gmra.mrb[0].mxu0 %v1447
        %v1694 = vpop.f32.mrb[0].mxu0
        %v1695 = vadd.f32 %v1590, %v1694
        %v1696 = vpop.f32.mrb[0].mxu0
        %1697 = vmatprep.mubr.f32.mxu0 %v1450
        %1698 = vmatmul.mubr.f32.gmra.mrb[0].mxu0 %v1449
        %v1699 = vpop.f32.mrb[0].mxu0
        %v1700 = vadd.f32 %v1595, %v1699
        %v1701 = vpop.f32.mrb[0].mxu0
        %1702 = vmatprep.mubr.f32.mxu0 %v1452
        %1703 = vmatmul.mubr.f32.gmra.mrb[0].mxu0 %v1451
        %v1704 = vpop.f32.mrb[0].mxu0
        %v1705 = vadd.f32 %v1600, %v1704
        %v1706 = vpop.f32.mrb[0].mxu0
        %1707 = vmatprep.mubr.f32.mxu0 %v1454
        %1708 = vmatmul.mubr.f32.gmra.mrb[0].mxu0 %v1453
        %v1709 = vpop.f32.mrb[0].mxu0
        %v1710 = vadd.f32 %v1605, %v1709
        %v1711 = vpop.f32.mrb[0].mxu0
        %1712 = vdwg.mxu0
        %v1713 = vld [vmem:[%s10] sm:$0x1]
        %v1715 = vlaneseq
        %v1716 = vshrl.u32 %v1715, 7
        %v1717 = vsub.s32 0, %v1716
        %v1718 = vrot.slane %v1713, %v1717
        %v1720 = vadd.f32 %v1675, %v1718
        %v1721 = vadd.f32 %v1680, %v1718
        %v1722 = vadd.f32 %v1685, %v1718
        %v1723 = vadd.f32 %v1690, %v1718
        %v1724 = vadd.f32 %v1695, %v1718
        %v1725 = vadd.f32 %v1700, %v1718
        %v1726 = vadd.f32 %v1705, %v1718
        %v1727 = vadd.f32 %v1710, %v1718
        %1728 = vmax.xlane.f32.xlu0 %v1720
        %v1729 = vpop.xlane.xlu0 %1728
        %1730 = vmax.xlane.f32.xlu0 %v1721
        %v1731 = vpop.xlane.xlu0 %1730
        %1732 = vmax.xlane.f32.xlu0 %v1722
        %v1733 = vpop.xlane.xlu0 %1732
        %1734 = vmax.xlane.f32.xlu0 %v1723
        %v1735 = vpop.xlane.xlu0 %1734
        %1736 = vmax.xlane.f32.xlu0 %v1724
        %v1737 = vpop.xlane.xlu0 %1736
        %1738 = vmax.xlane.f32.xlu0 %v1725
        %v1739 = vpop.xlane.xlu0 %1738
        %1740 = vmax.xlane.f32.xlu0 %v1726
        %v1741 = vpop.xlane.xlu0 %1740
        %1742 = vmax.xlane.f32.xlu0 %v1727
        %v1743 = vpop.xlane.xlu0 %1742
        %v1744 = vsub.f32 %v1720, %v1729
        %v1745 = vsub.f32 %v1721, %v1731
        %v1746 = vsub.f32 %v1722, %v1733
        %v1747 = vsub.f32 %v1723, %v1735
        %v1748 = vsub.f32 %v1724, %v1737
        %v1749 = vsub.f32 %v1725, %v1739
        %v1750 = vsub.f32 %v1726, %v1741
        %v1751 = vsub.f32 %v1727, %v1743
        %v1752 = vmul.f32 %v1744, 1.442695
        %v1753 = vpow.pop %v1752
        %v1754 = vmul.f32 %v1745, 1.442695
        %v1755 = vpow.pop %v1754
        %v1756 = vmul.f32 %v1746, 1.442695
        %v1757 = vpow.pop %v1756
        %v1758 = vmul.f32 %v1747, 1.442695
        %v1759 = vpow.pop %v1758
        %v1760 = vmul.f32 %v1748, 1.442695
        %v1761 = vpow.pop %v1760
        %v1762 = vmul.f32 %v1749, 1.442695
        %v1763 = vpow.pop %v1762
        %v1764 = vmul.f32 %v1750, 1.442695
        %v1765 = vpow.pop %v1764
        %v1766 = vmul.f32 %v1751, 1.442695
        %v1767 = vpow.pop %v1766
        %1768 = vadd.xlane.f32.xlu0 %v1753
        %v1769 = vpop.xlane.xlu0 %1768
        %1770 = vadd.xlane.f32.xlu0 %v1755
        %v1771 = vpop.xlane.xlu0 %1770
        %1772 = vadd.xlane.f32.xlu0 %v1757
        %v1773 = vpop.xlane.xlu0 %1772
        %1774 = vadd.xlane.f32.xlu0 %v1759
        %v1775 = vpop.xlane.xlu0 %1774
        %1776 = vadd.xlane.f32.xlu0 %v1761
        %v1777 = vpop.xlane.xlu0 %1776
        %1778 = vadd.xlane.f32.xlu0 %v1763
        %v1779 = vpop.xlane.xlu0 %1778
        %1780 = vadd.xlane.f32.xlu0 %v1765
        %v1781 = vpop.xlane.xlu0 %1780
        %1782 = vadd.xlane.f32.xlu0 %v1767
        %v1783 = vpop.xlane.xlu0 %1782
        %v1784 = vlog2.pop %v1769
        %v1785 = vmul.f32 %v1784, 0.6931472
        %v1786 = vlog2.pop %v1771
        %v1787 = vmul.f32 %v1786, 0.6931472
        %v1788 = vlog2.pop %v1773
        %v1789 = vmul.f32 %v1788, 0.6931472
        %v1790 = vlog2.pop %v1775
        %v1791 = vmul.f32 %v1790, 0.6931472
        %v1792 = vlog2.pop %v1777
        %v1793 = vmul.f32 %v1792, 0.6931472
        %v1794 = vlog2.pop %v1779
        %v1795 = vmul.f32 %v1794, 0.6931472
        %v1796 = vlog2.pop %v1781
        %v1797 = vmul.f32 %v1796, 0.6931472
        %v1798 = vlog2.pop %v1783
        %v1799 = vmul.f32 %v1798, 0.6931472
        %v1800 = vsub.f32 %v1744, %v1785
        %v1801 = vsub.f32 %v1745, %v1787
        %v1802 = vsub.f32 %v1746, %v1789
        %v1803 = vsub.f32 %v1747, %v1791
        %v1804 = vsub.f32 %v1748, %v1793
        %v1805 = vsub.f32 %v1749, %v1795
        %v1806 = vsub.f32 %v1750, %v1797
        %v1807 = vsub.f32 %v1751, %v1799
        %v1808 = vld [vmem:[#allocation8] sm:$0xff]
        %v1809 = vld [vmem:[#allocation8 + $0x8] sm:$0xff]
        %v1810 = vld [vmem:[#allocation8 + $0x10] sm:$0xff]
        %v1811 = vld [vmem:[#allocation8 + $0x18] sm:$0xff]
        %v1812 = vld [vmem:[#allocation8 + $0x20] sm:$0xff]
        %v1813 = vld [vmem:[#allocation8 + $0x28] sm:$0xff]
        %v1814 = vld [vmem:[#allocation8 + $0x30] sm:$0xff]
        %v1815 = vld [vmem:[#allocation8 + $0x38] sm:$0xff]
        %v1816 = vld [vmem:[#allocation8 + $0x40] sm:$0xff]
        %v1817 = vld [vmem:[#allocation8 + $0x48] sm:$0xff]
        %v1818 = vld [vmem:[#allocation8 + $0x50] sm:$0xff]
        %v1819 = vld [vmem:[#allocation8 + $0x58] sm:$0xff]
        %v1820 = vld [vmem:[#allocation8 + $0x60] sm:$0xff]
        %v1821 = vld [vmem:[#allocation8 + $0x68] sm:$0xff]
        %v1822 = vld [vmem:[#allocation8 + $0x70] sm:$0xff]
        %v1823 = vld [vmem:[#allocation8 + $0x78] sm:$0xff]
        %v1824 = vld [vmem:[#allocation8 + $0x80] sm:$0xff]
        %v1825 = vld [vmem:[#allocation8 + $0x88] sm:$0xff]
        %v1826 = vld [vmem:[#allocation8 + $0x90] sm:$0xff]
        %v1827 = vld [vmem:[#allocation8 + $0x98] sm:$0xff]
        %v1828 = vld [vmem:[#allocation8 + $0xa0] sm:$0xff]
        %v1829 = vld [vmem:[#allocation8 + $0xa8] sm:$0xff]
        %v1830 = vld [vmem:[#allocation8 + $0xb0] sm:$0xff]
        %v1831 = vld [vmem:[#allocation8 + $0xb8] sm:$0xff]
        %v1832 = vld [vmem:[#allocation8 + $0xc0] sm:$0xff]
        %v1833 = vld [vmem:[#allocation8 + $0xc8] sm:$0xff]
        %v1834 = vld [vmem:[#allocation8 + $0xd0] sm:$0xff]
        %v1835 = vld [vmem:[#allocation8 + $0xd8] sm:$0xff]
        %v1836 = vld [vmem:[#allocation8 + $0xe0] sm:$0xff]
        %v1837 = vld [vmem:[#allocation8 + $0xe8] sm:$0xff]
        %v1838 = vld [vmem:[#allocation8 + $0xf0] sm:$0xff]
        %v1839 = vld [vmem:[#allocation8 + $0xf8] sm:$0xff]
        %v1840 = vld [vmem:[%s12] sm:$0x3]
        %v1842 = vlaneseq
        %v1843 = vshrl.u32 %v1842, 7
        %v1844 = vsub.s32 0, %v1843
        %v1845 = vrot.slane %v1840, %v1844
        %v1846 = vlaneseq
        %v1847 = vshrl.u32 %v1846, 7
        %v1848 = vsub.s32 1, %v1847
        %v1849 = vrot.slane %v1840, %v1848
        %1852 = vmatprep.subr.mxu0 %v1809
        %1853 = vmatpush1.msra.mxu0 %v1808
        %1854 = vmatprep.subr.mxu0 %v1811
        %1855 = vmatpush1.msra.mxu0 %v1810
        %1856 = vmatprep.subr.mxu0 %v1813
        %1857 = vmatpush1.msra.mxu0 %v1812
        %1858 = vmatprep.subr.mxu0 %v1815
        %1859 = vmatpush1.msra.mxu0 %v1814
        %1860 = vmatprep.subr.mxu0 %v1817
        %1861 = vmatpush1.msra.mxu0 %v1816
        %1862 = vmatprep.subr.mxu0 %v1819
        %1863 = vmatpush1.msra.mxu0 %v1818
        %1864 = vmatprep.subr.mxu0 %v1821
        %1865 = vmatpush1.msra.mxu0 %v1820
        %1866 = vmatprep.subr.mxu0 %v1823
        %1867 = vmatpush1.msra.mxu0 %v1822
        %1868 = vmatprep.subr.mxu0 %v1825
        %1869 = vmatpush1.msra.mxu0 %v1824
        %1870 = vmatprep.subr.mxu0 %v1827
        %1871 = vmatpush1.msra.mxu0 %v1826
        %1872 = vmatprep.subr.mxu0 %v1829
        %1873 = vmatpush1.msra.mxu0 %v1828
        %1874 = vmatprep.subr.mxu0 %v1831
        %1875 = vmatpush1.msra.mxu0 %v1830
        %1876 = vmatprep.subr.mxu0 %v1833
        %1877 = vmatpush1.msra.mxu0 %v1832
        %1878 = vmatprep.subr.mxu0 %v1835
        %1879 = vmatpush1.msra.mxu0 %v1834
        %1880 = vmatprep.subr.mxu0 %v1837
        %1881 = vmatpush1.msra.mxu0 %v1836
        %1882 = vmatprep.subr.mxu0 %v1839
        %1883 = vmatpush1.msra.mxu0 %v1838
        %1884 = vmatprep.subr.mxu0 0.0
        %1885 = vmatpush1.msra.mxu0 0.0
        %1886 = vmatprep.subr.mxu0 0.0
        %1887 = vmatpush1.msra.mxu0 0.0
        %1888 = vmatprep.subr.mxu0 0.0
        %1889 = vmatpush1.msra.mxu0 0.0
        %1890 = vmatprep.subr.mxu0 0.0
        %1891 = vmatpush1.msra.mxu0 0.0
        %1892 = vmatprep.subr.mxu0 0.0
        %1893 = vmatpush1.msra.mxu0 0.0
        %1894 = vmatprep.subr.mxu0 0.0
        %1895 = vmatpush1.msra.mxu0 0.0
        %1896 = vmatprep.subr.mxu0 0.0
        %1897 = vmatpush1.msra.mxu0 0.0
        %1898 = vmatprep.subr.mxu0 0.0
        %1899 = vmatpush1.msra.mxu0 0.0
        %1900 = vmatprep.subr.mxu0 0.0
        %1901 = vmatpush1.msra.mxu0 0.0
        %1902 = vmatprep.subr.mxu0 0.0
        %1903 = vmatpush1.msra.mxu0 0.0
        %1904 = vmatprep.subr.mxu0 0.0
        %1905 = vmatpush1.msra.mxu0 0.0
        %1906 = vmatprep.subr.mxu0 0.0
        %1907 = vmatpush1.msra.mxu0 0.0
        %1908 = vmatprep.subr.mxu0 0.0
        %1909 = vmatpush1.msra.mxu0 0.0
        %1910 = vmatprep.subr.mxu0 0.0
        %1911 = vmatpush1.msra.mxu0 0.0
        %1912 = vmatprep.subr.mxu0 0.0
        %1913 = vmatpush1.msra.mxu0 0.0
        %1914 = vmatprep.subr.mxu0 0.0
        %1915 = vmatpush1.msra.mxu0 0.0
        %1916 = vmatprep.mubr.f32.mxu0 0.0
        %1917 = vmatmul.mubr.f32.gmra.mrb[0].mxu0 %v1274
        %v1918 = vpop.f32.mrb[0].mxu0
        %v1919 = vadd.f32 %v1845, %v1918
        %v1920 = vpop.f32.mrb[0].mxu0
        %v1921 = vadd.f32 %v1849, %v1920
        %1922 = vmatprep.mubr.f32.mxu0 0.0
        %1923 = vmatmul.mubr.f32.gmra.mrb[0].mxu0 %v1275
        %v1924 = vpop.f32.mrb[0].mxu0
        %v1925 = vadd.f32 %v1845, %v1924
        %v1926 = vpop.f32.mrb[0].mxu0
        %v1927 = vadd.f32 %v1849, %v1926
        %1928 = vmatprep.mubr.f32.mxu0 0.0
        %1929 = vmatmul.mubr.f32.gmra.mrb[0].mxu0 %v1276
        %v1930 = vpop.f32.mrb[0].mxu0
        %v1931 = vadd.f32 %v1845, %v1930
        %v1932 = vpop.f32.mrb[0].mxu0
        %v1933 = vadd.f32 %v1849, %v1932
        %1934 = vmatprep.mubr.f32.mxu0 0.0
        %1935 = vmatmul.mubr.f32.gmra.mrb[0].mxu0 %v1277
        %v1936 = vpop.f32.mrb[0].mxu0
        %v1937 = vadd.f32 %v1845, %v1936
        %v1938 = vpop.f32.mrb[0].mxu0
        %v1939 = vadd.f32 %v1849, %v1938
        %1940 = vmatprep.mubr.f32.mxu0 0.0
        %1941 = vmatmul.mubr.f32.gmra.mrb[0].mxu0 %v1278
        %v1942 = vpop.f32.mrb[0].mxu0
        %v1943 = vadd.f32 %v1845, %v1942
        %v1944 = vpop.f32.mrb[0].mxu0
        %v1945 = vadd.f32 %v1849, %v1944
        %1946 = vmatprep.mubr.f32.mxu0 0.0
        %1947 = vmatmul.mubr.f32.gmra.mrb[0].mxu0 %v1279
        %v1948 = vpop.f32.mrb[0].mxu0
        %v1949 = vadd.f32 %v1845, %v1948
        %v1950 = vpop.f32.mrb[0].mxu0
        %v1951 = vadd.f32 %v1849, %v1950
        %1952 = vmatprep.mubr.f32.mxu0 0.0
        %1953 = vmatmul.mubr.f32.gmra.mrb[0].mxu0 %v1280
        %v1954 = vpop.f32.mrb[0].mxu0
        %v1955 = vadd.f32 %v1845, %v1954
        %v1956 = vpop.f32.mrb[0].mxu0
        %v1957 = vadd.f32 %v1849, %v1956
        %1958 = vmatprep.mubr.f32.mxu0 0.0
        %1959 = vmatmul.mubr.f32.gmra.mrb[0].mxu0 %v1281
        %v1960 = vpop.f32.mrb[0].mxu0
        %v1961 = vadd.f32 %v1845, %v1960
        %v1962 = vpop.f32.mrb[0].mxu0
        %v1963 = vadd.f32 %v1849, %v1962
        %1964 = vdwg.mxu0
        %v1965 = vmax.f32 %v1919, 0.0
        %v1966 = vmax.f32 %v1921, 0.0
        %v1967 = vmax.f32 %v1925, 0.0
        %v1968 = vmax.f32 %v1927, 0.0
        %v1969 = vmax.f32 %v1931, 0.0
        %v1970 = vmax.f32 %v1933, 0.0
        %v1971 = vmax.f32 %v1937, 0.0
        %v1972 = vmax.f32 %v1939, 0.0
        %v1973 = vmax.f32 %v1943, 0.0
        %v1974 = vmax.f32 %v1945, 0.0
        %v1975 = vmax.f32 %v1949, 0.0
        %v1976 = vmax.f32 %v1951, 0.0
        %v1977 = vmax.f32 %v1955, 0.0
        %v1978 = vmax.f32 %v1957, 0.0
        %v1979 = vmax.f32 %v1961, 0.0
        %v1980 = vmax.f32 %v1963, 0.0
        %v1981 = vld [vmem:[#allocation10] sm:$0xff]
        %v1982 = vld [vmem:[#allocation10 + $0x8] sm:$0xff]
        %v1983 = vld [vmem:[#allocation10 + $0x10] sm:$0xff]
        %v1984 = vld [vmem:[#allocation10 + $0x18] sm:$0xff]
        %v1985 = vld [vmem:[#allocation10 + $0x20] sm:$0xff]
        %v1986 = vld [vmem:[#allocation10 + $0x28] sm:$0xff]
        %v1987 = vld [vmem:[#allocation10 + $0x30] sm:$0xff]
        %v1988 = vld [vmem:[#allocation10 + $0x38] sm:$0xff]
        %v1989 = vld [vmem:[#allocation10 + $0x40] sm:$0xff]
        %v1990 = vld [vmem:[#allocation10 + $0x48] sm:$0xff]
        %v1991 = vld [vmem:[#allocation10 + $0x50] sm:$0xff]
        %v1992 = vld [vmem:[#allocation10 + $0x58] sm:$0xff]
        %v1993 = vld [vmem:[#allocation10 + $0x60] sm:$0xff]
        %v1994 = vld [vmem:[#allocation10 + $0x68] sm:$0xff]
        %v1995 = vld [vmem:[#allocation10 + $0x70] sm:$0xff]
        %v1996 = vld [vmem:[#allocation10 + $0x78] sm:$0xff]
        %v1997 = vld [vmem:[#allocation10 + $0x80] sm:$0xff]
        %v1998 = vld [vmem:[#allocation10 + $0x88] sm:$0xff]
        %v1999 = vld [vmem:[#allocation10 + $0x90] sm:$0xff]
        %v2000 = vld [vmem:[#allocation10 + $0x98] sm:$0xff]
        %v2001 = vld [vmem:[#allocation10 + $0xa0] sm:$0xff]
        %v2002 = vld [vmem:[#allocation10 + $0xa8] sm:$0xff]
        %v2003 = vld [vmem:[#allocation10 + $0xb0] sm:$0xff]
        %v2004 = vld [vmem:[#allocation10 + $0xb8] sm:$0xff]
        %v2005 = vld [vmem:[#allocation10 + $0xc0] sm:$0xff]
        %v2006 = vld [vmem:[#allocation10 + $0xc8] sm:$0xff]
        %v2007 = vld [vmem:[#allocation10 + $0xd0] sm:$0xff]
        %v2008 = vld [vmem:[#allocation10 + $0xd8] sm:$0xff]
        %v2009 = vld [vmem:[#allocation10 + $0xe0] sm:$0xff]
        %v2010 = vld [vmem:[#allocation10 + $0xe8] sm:$0xff]
        %v2011 = vld [vmem:[#allocation10 + $0xf0] sm:$0xff]
        %v2012 = vld [vmem:[#allocation10 + $0xf8] sm:$0xff]
        %v2013 = vld [vmem:[#allocation11] sm:$0xff]
        %v2014 = vld [vmem:[#allocation11 + $0x8] sm:$0xff]
        %v2015 = vld [vmem:[#allocation11 + $0x10] sm:$0xff]
        %v2016 = vld [vmem:[#allocation11 + $0x18] sm:$0xff]
        %v2017 = vld [vmem:[#allocation11 + $0x20] sm:$0xff]
        %v2018 = vld [vmem:[#allocation11 + $0x28] sm:$0xff]
        %v2019 = vld [vmem:[#allocation11 + $0x30] sm:$0xff]
        %v2020 = vld [vmem:[#allocation11 + $0x38] sm:$0xff]
        %v2021 = vld [vmem:[#allocation11 + $0x40] sm:$0xff]
        %v2022 = vld [vmem:[#allocation11 + $0x48] sm:$0xff]
        %v2023 = vld [vmem:[#allocation11 + $0x50] sm:$0xff]
        %v2024 = vld [vmem:[#allocation11 + $0x58] sm:$0xff]
        %v2025 = vld [vmem:[#allocation11 + $0x60] sm:$0xff]
        %v2026 = vld [vmem:[#allocation11 + $0x68] sm:$0xff]
        %v2027 = vld [vmem:[#allocation11 + $0x70] sm:$0xff]
        %v2028 = vld [vmem:[#allocation11 + $0x78] sm:$0xff]
        %2029 = vmatprep.subr.mxu0 0.0
        %2030 = vmatpush1.msra.mxu0 %v2013
        %2031 = vmatprep.subr.mxu0 0.0
        %2032 = vmatpush1.msra.mxu0 %v2014
        %2033 = vmatprep.subr.mxu0 0.0
        %2034 = vmatpush1.msra.mxu0 %v2015
        %2035 = vmatprep.subr.mxu0 0.0
        %2036 = vmatpush1.msra.mxu0 %v2016
        %2037 = vmatprep.subr.mxu0 0.0
        %2038 = vmatpush1.msra.mxu0 %v2017
        %2039 = vmatprep.subr.mxu0 0.0
        %2040 = vmatpush1.msra.mxu0 %v2018
        %2041 = vmatprep.subr.mxu0 0.0
        %2042 = vmatpush1.msra.mxu0 %v2019
        %2043 = vmatprep.subr.mxu0 0.0
        %2044 = vmatpush1.msra.mxu0 %v2020
        %2045 = vmatprep.subr.mxu0 0.0
        %2046 = vmatpush1.msra.mxu0 %v2021
        %2047 = vmatprep.subr.mxu0 0.0
        %2048 = vmatpush1.msra.mxu0 %v2022
        %2049 = vmatprep.subr.mxu0 0.0
        %2050 = vmatpush1.msra.mxu0 %v2023
        %2051 = vmatprep.subr.mxu0 0.0
        %2052 = vmatpush1.msra.mxu0 %v2024
        %2053 = vmatprep.subr.mxu0 0.0
        %2054 = vmatpush1.msra.mxu0 %v2025
        %2055 = vmatprep.subr.mxu0 0.0
        %2056 = vmatpush1.msra.mxu0 %v2026
        %2057 = vmatprep.subr.mxu0 0.0
        %2058 = vmatpush1.msra.mxu0 %v2027
        %2059 = vmatprep.subr.mxu0 0.0
        %2060 = vmatpush1.msra.mxu0 %v2028
        %2061 = vmatprep.subr.mxu0 0.0
        %2062 = vmatpush1.msra.mxu0 0.0
        %2063 = vmatprep.subr.mxu0 0.0
        %2064 = vmatpush1.msra.mxu0 0.0
        %2065 = vmatprep.subr.mxu0 0.0
        %2066 = vmatpush1.msra.mxu0 0.0
        %2067 = vmatprep.subr.mxu0 0.0
        %2068 = vmatpush1.msra.mxu0 0.0
        %2069 = vmatprep.subr.mxu0 0.0
        %2070 = vmatpush1.msra.mxu0 0.0
        %2071 = vmatprep.subr.mxu0 0.0
        %2072 = vmatpush1.msra.mxu0 0.0
        %2073 = vmatprep.subr.mxu0 0.0
        %2074 = vmatpush1.msra.mxu0 0.0
        %2075 = vmatprep.subr.mxu0 0.0
        %2076 = vmatpush1.msra.mxu0 0.0
        %2077 = vmatprep.subr.mxu0 0.0
        %2078 = vmatpush1.msra.mxu0 0.0
        %2079 = vmatprep.subr.mxu0 0.0
        %2080 = vmatpush1.msra.mxu0 0.0
        %2081 = vmatprep.subr.mxu0 0.0
        %2082 = vmatpush1.msra.mxu0 0.0
        %2083 = vmatprep.subr.mxu0 0.0
        %2084 = vmatpush1.msra.mxu0 0.0
        %2085 = vmatprep.subr.mxu0 0.0
        %2086 = vmatpush1.msra.mxu0 0.0
        %2087 = vmatprep.subr.mxu0 0.0
        %2088 = vmatpush1.msra.mxu0 0.0
        %2089 = vmatprep.subr.mxu0 0.0
        %2090 = vmatpush1.msra.mxu0 0.0
        %2091 = vmatprep.subr.mxu0 0.0
        %2092 = vmatpush1.msra.mxu0 0.0
        %2093 = vmatprep.mubr.f32.mxu0 0.0
        %2094 = vmatmul.mubr.f32.gmra.mrb[0].mxu0 %v1274
        %v2095 = vpop.f32.mrb[0].mxu0
        %v2096 = vadd.f32 0.0, %v2095
        %v2097 = vpop.f32.mrb[0].mxu0
        %2098 = vmatprep.mubr.f32.mxu0 0.0
        %2099 = vmatmul.mubr.f32.gmra.mrb[0].mxu0 %v1275
        %v2100 = vpop.f32.mrb[0].mxu0
        %v2101 = vadd.f32 0.0, %v2100
        %v2102 = vpop.f32.mrb[0].mxu0
        %2103 = vmatprep.mubr.f32.mxu0 0.0
        %2104 = vmatmul.mubr.f32.gmra.mrb[0].mxu0 %v1276
        %v2105 = vpop.f32.mrb[0].mxu0
        %v2106 = vadd.f32 0.0, %v2105
        %v2107 = vpop.f32.mrb[0].mxu0
        %2108 = vmatprep.mubr.f32.mxu0 0.0
        %2109 = vmatmul.mubr.f32.gmra.mrb[0].mxu0 %v1277
        %v2110 = vpop.f32.mrb[0].mxu0
        %v2111 = vadd.f32 0.0, %v2110
        %v2112 = vpop.f32.mrb[0].mxu0
        %2113 = vmatprep.mubr.f32.mxu0 0.0
        %2114 = vmatmul.mubr.f32.gmra.mrb[0].mxu0 %v1278
        %v2115 = vpop.f32.mrb[0].mxu0
        %v2116 = vadd.f32 0.0, %v2115
        %v2117 = vpop.f32.mrb[0].mxu0
        %2118 = vmatprep.mubr.f32.mxu0 0.0
        %2119 = vmatmul.mubr.f32.gmra.mrb[0].mxu0 %v1279
        %v2120 = vpop.f32.mrb[0].mxu0
        %v2121 = vadd.f32 0.0, %v2120
        %v2122 = vpop.f32.mrb[0].mxu0
        %2123 = vmatprep.mubr.f32.mxu0 0.0
        %2124 = vmatmul.mubr.f32.gmra.mrb[0].mxu0 %v1280
        %v2125 = vpop.f32.mrb[0].mxu0
        %v2126 = vadd.f32 0.0, %v2125
        %v2127 = vpop.f32.mrb[0].mxu0
        %2128 = vmatprep.mubr.f32.mxu0 0.0
        %2129 = vmatmul.mubr.f32.gmra.mrb[0].mxu0 %v1281
        %v2130 = vpop.f32.mrb[0].mxu0
        %v2131 = vadd.f32 0.0, %v2130
        %v2132 = vpop.f32.mrb[0].mxu0
        %2133 = vdwg.mxu0
        %2134 = vmatprep.subr.mxu0 0.0
        %2135 = vmatpush1.msra.mxu0 %v1981
        %2136 = vmatprep.subr.mxu0 0.0
        %2137 = vmatpush1.msra.mxu0 %v1982
        %2138 = vmatprep.subr.mxu0 0.0
        %2139 = vmatpush1.msra.mxu0 %v1983
        %2140 = vmatprep.subr.mxu0 0.0
        %2141 = vmatpush1.msra.mxu0 %v1984
        %2142 = vmatprep.subr.mxu0 0.0
        %2143 = vmatpush1.msra.mxu0 %v1985
        %2144 = vmatprep.subr.mxu0 0.0
        %2145 = vmatpush1.msra.mxu0 %v1986
        %2146 = vmatprep.subr.mxu0 0.0
        %2147 = vmatpush1.msra.mxu0 %v1987
        %2148 = vmatprep.subr.mxu0 0.0
        %2149 = vmatpush1.msra.mxu0 %v1988
        %2150 = vmatprep.subr.mxu0 0.0
        %2151 = vmatpush1.msra.mxu0 %v1989
        %2152 = vmatprep.subr.mxu0 0.0
        %2153 = vmatpush1.msra.mxu0 %v1990
        %2154 = vmatprep.subr.mxu0 0.0
        %2155 = vmatpush1.msra.mxu0 %v1991
        %2156 = vmatprep.subr.mxu0 0.0
        %2157 = vmatpush1.msra.mxu0 %v1992
        %2158 = vmatprep.subr.mxu0 0.0
        %2159 = vmatpush1.msra.mxu0 %v1993
        %2160 = vmatprep.subr.mxu0 0.0
        %2161 = vmatpush1.msra.mxu0 %v1994
        %2162 = vmatprep.subr.mxu0 0.0
        %2163 = vmatpush1.msra.mxu0 %v1995
        %2164 = vmatprep.subr.mxu0 0.0
        %2165 = vmatpush1.msra.mxu0 %v1996
        %2166 = vmatprep.subr.mxu0 0.0
        %2167 = vmatpush1.msra.mxu0 %v1997
        %2168 = vmatprep.subr.mxu0 0.0
        %2169 = vmatpush1.msra.mxu0 %v1998
        %2170 = vmatprep.subr.mxu0 0.0
        %2171 = vmatpush1.msra.mxu0 %v1999
        %2172 = vmatprep.subr.mxu0 0.0
        %2173 = vmatpush1.msra.mxu0 %v2000
        %2174 = vmatprep.subr.mxu0 0.0
        %2175 = vmatpush1.msra.mxu0 %v2001
        %2176 = vmatprep.subr.mxu0 0.0
        %2177 = vmatpush1.msra.mxu0 %v2002
        %2178 = vmatprep.subr.mxu0 0.0
        %2179 = vmatpush1.msra.mxu0 %v2003
        %2180 = vmatprep.subr.mxu0 0.0
        %2181 = vmatpush1.msra.mxu0 %v2004
        %2182 = vmatprep.subr.mxu0 0.0
        %2183 = vmatpush1.msra.mxu0 %v2005
        %2184 = vmatprep.subr.mxu0 0.0
        %2185 = vmatpush1.msra.mxu0 %v2006
        %2186 = vmatprep.subr.mxu0 0.0
        %2187 = vmatpush1.msra.mxu0 %v2007
        %2188 = vmatprep.subr.mxu0 0.0
        %2189 = vmatpush1.msra.mxu0 %v2008
        %2190 = vmatprep.subr.mxu0 0.0
        %2191 = vmatpush1.msra.mxu0 %v2009
        %2192 = vmatprep.subr.mxu0 0.0
        %2193 = vmatpush1.msra.mxu0 %v2010
        %2194 = vmatprep.subr.mxu0 0.0
        %2195 = vmatpush1.msra.mxu0 %v2011
        %2196 = vmatprep.subr.mxu0 0.0
        %2197 = vmatpush1.msra.mxu0 %v2012
        %2198 = vmatprep.mubr.f32.mxu0 %v1966
        %2199 = vmatmul.mubr.f32.gmra.mrb[0].mxu0 %v1965
        %v2200 = vpop.f32.mrb[0].mxu0
        %v2201 = vadd.f32 %v2096, %v2200
        %v2202 = vpop.f32.mrb[0].mxu0
        %2203 = vmatprep.mubr.f32.mxu0 %v1968
        %2204 = vmatmul.mubr.f32.gmra.mrb[0].mxu0 %v1967
        %v2205 = vpop.f32.mrb[0].mxu0
        %v2206 = vadd.f32 %v2101, %v2205
        %v2207 = vpop.f32.mrb[0].mxu0
        %2208 = vmatprep.mubr.f32.mxu0 %v1970
        %2209 = vmatmul.mubr.f32.gmra.mrb[0].mxu0 %v1969
        %v2210 = vpop.f32.mrb[0].mxu0
        %v2211 = vadd.f32 %v2106, %v2210
        %v2212 = vpop.f32.mrb[0].mxu0
        %2213 = vmatprep.mubr.f32.mxu0 %v1972
        %2214 = vmatmul.mubr.f32.gmra.mrb[0].mxu0 %v1971
        %v2215 = vpop.f32.mrb[0].mxu0
        %v2216 = vadd.f32 %v2111, %v2215
        %v2217 = vpop.f32.mrb[0].mxu0
        %2218 = vmatprep.mubr.f32.mxu0 %v1974
        %2219 = vmatmul.mubr.f32.gmra.mrb[0].mxu0 %v1973
        %v2220 = vpop.f32.mrb[0].mxu0
        %v2221 = vadd.f32 %v2116, %v2220
        %v2222 = vpop.f32.mrb[0].mxu0
        %2223 = vmatprep.mubr.f32.mxu0 %v1976
        %2224 = vmatmul.mubr.f32.gmra.mrb[0].mxu0 %v1975
        %v2225 = vpop.f32.mrb[0].mxu0
        %v2226 = vadd.f32 %v2121, %v2225
        %v2227 = vpop.f32.mrb[0].mxu0
        %2228 = vmatprep.mubr.f32.mxu0 %v1978
        %2229 = vmatmul.mubr.f32.gmra.mrb[0].mxu0 %v1977
        %v2230 = vpop.f32.mrb[0].mxu0
        %v2231 = vadd.f32 %v2126, %v2230
        %v2232 = vpop.f32.mrb[0].mxu0
        %2233 = vmatprep.mubr.f32.mxu0 %v1980
        %2234 = vmatmul.mubr.f32.gmra.mrb[0].mxu0 %v1979
        %v2235 = vpop.f32.mrb[0].mxu0
        %v2236 = vadd.f32 %v2131, %v2235
        %v2237 = vpop.f32.mrb[0].mxu0
        %2238 = vdwg.mxu0
        %v2239 = vld [vmem:[%s15] sm:$0x1]
        %v2241 = vlaneseq
        %v2242 = vshrl.u32 %v2241, 7
        %v2243 = vsub.s32 0, %v2242
        %v2244 = vrot.slane %v2239, %v2243
        %v2246 = vadd.f32 %v2201, %v2244
        %v2247 = vadd.f32 %v2206, %v2244
        %v2248 = vadd.f32 %v2211, %v2244
        %v2249 = vadd.f32 %v2216, %v2244
        %v2250 = vadd.f32 %v2221, %v2244
        %v2251 = vadd.f32 %v2226, %v2244
        %v2252 = vadd.f32 %v2231, %v2244
        %v2253 = vadd.f32 %v2236, %v2244
        %2254 = vmax.xlane.f32.xlu0 %v2246
        %v2255 = vpop.xlane.xlu0 %2254
        %2256 = vmax.xlane.f32.xlu0 %v2247
        %v2257 = vpop.xlane.xlu0 %2256
        %2258 = vmax.xlane.f32.xlu0 %v2248
        %v2259 = vpop.xlane.xlu0 %2258
        %2260 = vmax.xlane.f32.xlu0 %v2249
        %v2261 = vpop.xlane.xlu0 %2260
        %2262 = vmax.xlane.f32.xlu0 %v2250
        %v2263 = vpop.xlane.xlu0 %2262
        %2264 = vmax.xlane.f32.xlu0 %v2251
        %v2265 = vpop.xlane.xlu0 %2264
        %2266 = vmax.xlane.f32.xlu0 %v2252
        %v2267 = vpop.xlane.xlu0 %2266
        %2268 = vmax.xlane.f32.xlu0 %v2253
        %v2269 = vpop.xlane.xlu0 %2268
        %v2270 = vsub.f32 %v2246, %v2255
        %v2271 = vsub.f32 %v2247, %v2257
        %v2272 = vsub.f32 %v2248, %v2259
        %v2273 = vsub.f32 %v2249, %v2261
        %v2274 = vsub.f32 %v2250, %v2263
        %v2275 = vsub.f32 %v2251, %v2265
        %v2276 = vsub.f32 %v2252, %v2267
        %v2277 = vsub.f32 %v2253, %v2269
        %v2278 = vmul.f32 %v2270, 1.442695
        %v2279 = vpow.pop %v2278
        %v2280 = vmul.f32 %v2271, 1.442695
        %v2281 = vpow.pop %v2280
        %v2282 = vmul.f32 %v2272, 1.442695
        %v2283 = vpow.pop %v2282
        %v2284 = vmul.f32 %v2273, 1.442695
        %v2285 = vpow.pop %v2284
        %v2286 = vmul.f32 %v2274, 1.442695
        %v2287 = vpow.pop %v2286
        %v2288 = vmul.f32 %v2275, 1.442695
        %v2289 = vpow.pop %v2288
        %v2290 = vmul.f32 %v2276, 1.442695
        %v2291 = vpow.pop %v2290
        %v2292 = vmul.f32 %v2277, 1.442695
        %v2293 = vpow.pop %v2292
        %2294 = vadd.xlane.f32.xlu0 %v2279
        %v2295 = vpop.xlane.xlu0 %2294
        %2296 = vadd.xlane.f32.xlu0 %v2281
        %v2297 = vpop.xlane.xlu0 %2296
        %2298 = vadd.xlane.f32.xlu0 %v2283
        %v2299 = vpop.xlane.xlu0 %2298
        %2300 = vadd.xlane.f32.xlu0 %v2285
        %v2301 = vpop.xlane.xlu0 %2300
        %2302 = vadd.xlane.f32.xlu0 %v2287
        %v2303 = vpop.xlane.xlu0 %2302
        %2304 = vadd.xlane.f32.xlu0 %v2289
        %v2305 = vpop.xlane.xlu0 %2304
        %2306 = vadd.xlane.f32.xlu0 %v2291
        %v2307 = vpop.xlane.xlu0 %2306
        %2308 = vadd.xlane.f32.xlu0 %v2293
        %v2309 = vpop.xlane.xlu0 %2308
        %v2310 = vlog2.pop %v2295
        %v2311 = vmul.f32 %v2310, 0.6931472
        %v2312 = vlog2.pop %v2297
        %v2313 = vmul.f32 %v2312, 0.6931472
        %v2314 = vlog2.pop %v2299
        %v2315 = vmul.f32 %v2314, 0.6931472
        %v2316 = vlog2.pop %v2301
        %v2317 = vmul.f32 %v2316, 0.6931472
        %v2318 = vlog2.pop %v2303
        %v2319 = vmul.f32 %v2318, 0.6931472
        %v2320 = vlog2.pop %v2305
        %v2321 = vmul.f32 %v2320, 0.6931472
        %v2322 = vlog2.pop %v2307
        %v2323 = vmul.f32 %v2322, 0.6931472
        %v2324 = vlog2.pop %v2309
        %v2325 = vmul.f32 %v2324, 0.6931472
        %v2326 = vsub.f32 %v2270, %v2311
        %v2327 = vsub.f32 %v2271, %v2313
        %v2328 = vsub.f32 %v2272, %v2315
        %v2329 = vsub.f32 %v2273, %v2317
        %v2330 = vsub.f32 %v2274, %v2319
        %v2331 = vsub.f32 %v2275, %v2321
        %v2332 = vsub.f32 %v2276, %v2323
        %v2333 = vsub.f32 %v2277, %v2325
        %v2334 = vmax.f32 %v1800, %v2326
        %v2335 = vmax.f32 %v1801, %v2327
        %v2336 = vmax.f32 %v1802, %v2328
        %v2337 = vmax.f32 %v1803, %v2329
        %v2338 = vmax.f32 %v1804, %v2330
        %v2339 = vmax.f32 %v1805, %v2331
        %v2340 = vmax.f32 %v1806, %v2332
        %v2341 = vmax.f32 %v1807, %v2333
        %2342 = vst [vmem:[%s653] sm:$0xff] %v2334
        %2343 = vst [vmem:[%s653 + $0x8] sm:$0xff] %v2335
        %2344 = vst [vmem:[%s653 + $0x10] sm:$0xff] %v2336
        %2345 = vst [vmem:[%s653 + $0x18] sm:$0xff] %v2337
        %2346 = vst [vmem:[%s653 + $0x20] sm:$0xff] %v2338
        %2347 = vst [vmem:[%s653 + $0x28] sm:$0xff] %v2339
        %2348 = vst [vmem:[%s653 + $0x30] sm:$0xff] %v2340
        %2349 = vst [vmem:[%s653 + $0x38] sm:$0xff] %v2341
        %s2350 = sand.u32 %s406, 1
        %s2351 = scalar_lea.sflag [#allocation4], %s2350
        %s2352 = sand.u32 %s406, 1
        %s2353 = smul.addr %s2352, 64
        %s2354 = scalar_lea.vmem [#allocation13], %s2353
        // Predicated region
        $region109: #{tpu_custom_call.1} parent=83 // pred_check
          %p2355 = pneg %p416
        $region110: #{tpu_custom_call.1} parent=83 // pred_check_branch
          %2357 = sbr.rel (%p2355) target = $region112
        $region111: #{tpu_custom_call.1} parent=83 // pred_region
          %s2358 = smul.u32 8, %s39
          %s2360 = ssub.s32 1024, 1024
          %2361 = vsyncadd %s2351, %s2360
          %s2362 = smul.addr %s38, 8
          %s2363 = sadd.s32 %s2358, %s2362
          %s2364 = smul.addr %s2363, 128
          %s2365 = scalar_lea.hbm %s16, %s2364
          %s2366 = sshll.u32 %s2354, 4
          %s2367 = int_to_ptr.vmem [resolvable:$true] %s2366
          %2372 = dma.vmem_to_hbm [thread:$0]  %s2367, 1024, %s2365, %s2351, 128, 128, 8
        $region112: #{tpu_custom_call.1} parent=83 // pred_fallthru
          _
      $region84: #{tpu_custom_call.1} parent=5 // pred_fallthru
        _
      %p2373 = scmp.le.s32.totalorder 2, %s29
      // Predicated region
      $region113: #{tpu_custom_call.1} parent=5 // pred_check
        %p2374 = pneg %p2373
      $region114: #{tpu_custom_call.1} parent=5 // pred_check_branch
        %2376 = sbr.rel (%p2374) target = $region116
      $region115: #{tpu_custom_call.1} parent=5 // pred_region
        %s2377 = ssub.s32 %s29, 2
        // Predicated region
        $region117: #{tpu_custom_call.1} parent=115 // pred_check
          %p2378 = pneg %p422
        $region118: #{tpu_custom_call.1} parent=115 // pred_check_branch
          %2380 = sbr.rel (%p2378) target = $region120
        $region119: #{tpu_custom_call.1} parent=115 // pred_region
          %s2381 = sand.u32 %s407, 1
          %s2382 = scalar_lea.sflag [#allocation4], %s2381
          %s2383 = sand.u32 %s407, 1
          %s2384 = smul.addr %s2383, 64
          %s2385 = scalar_lea.vmem [#allocation13], %s2384
          %2386 = dma.done %s2382, 1024
        $region120: #{tpu_custom_call.1} parent=115 // pred_fallthru
          _
      $region116: #{tpu_custom_call.1} parent=5 // pred_fallthru
        _
    $region6: #{tpu_custom_call.1} parent=1 // loop_footer
      %s33 = sadd.s32 1, %s29
    $region7: #{tpu_custom_call.1} parent=1 // loop_footer_branch
      %28 = sbr.rel target = $region3
    $region8: #{tpu_custom_call.1} parent=1 // loop_exit
      _
    %2387 = vsyncpa [#allocation3], 1
    %s2388 = scalar_lea.sflag [#allocation3], 1
    %2389 = vsyncpa %s2388, 1
    %2390 = vsyncpa [#allocation6], 1
    %2391 = vsyncpa [#allocation9], 1
    %2392 = vsyncpa [#allocation12], 1
    %2393 = vsyncpa [#allocation4], 1
    %s2394 = scalar_lea.sflag [#allocation4], 1
    %2395 = vsyncpa %s2394, 1

</llo_original>
